<compile_context>
chip_gen: v5e
topology: v5e:2x2
jax: 0.10.0
libtpu: 0.0.40
codegen_flags: <defaults>
</compile_context>

<pallas_src>
import jax
import jax.numpy as jnp
import numpy as np
from jax import lax
from jax.experimental import pallas as pl
from jax.experimental.pallas import tpu as pltpu  # noqa: F401  (kept for parity)

# ---- static problem sizes implied by the module (dense needs T = 384) ----
B = 2
C_EEG = 3
T = 384

T1 = T + 1            # 385: conv1 output width  (pad 32 each side, kernel 64)
P1_W = T1 // 4        # 96 : AvgPool2d((1,4)) output width
PADW = P1_W + 16      # 112: pool1 output pre-padded by 8 each side for conv3
T3 = P1_W + 1         # 97 : conv3 output width  (pad 8 each side, kernel 16)
P2_W = T3 // 8        # 12 : AvgPool2d((1,8)) output width
FEAT = 16 * P2_W      # 192 = 16*384//32  (dense in_features)
K1 = C_EEG * 64       # 192: im2col contraction size per batch


# ============================ Pallas kernel ============================

def _eeg_kernel(p_ref, wbd_ref, bc_ref, pool1_ref, w3_ref, w4_ref, b3_ref,
                d_ref, sel_ref, bd_ref, logit_ref, prob_ref):
    """Whole EEGModel forward (inference) on a batch stacked into sublanes."""

    def elu(v):
        # clamp the unselected branch argument so exp() never overflows
        return jnp.where(v > 0.0, v, jnp.exp(jnp.minimum(v, 0.0)) - 1.0)

    # conv1 + bn1 + conv2 + bn2 : one MXU matmul on the im2col slab with the
    # batch-block-diagonal fused weight.  Rows = b*16 + out_channel.
    c = jnp.dot(wbd_ref[...], p_ref[...],
                preferred_element_type=jnp.float32)            # (B*16, 385)
    c = elu(c + bc_ref[...])

    # AvgPool2d((1,4)) and the conv3 zero padding folded into one matrix.
    p1p = jnp.dot(c.astype(jnp.bfloat16), pool1_ref[...],
                  preferred_element_type=jnp.float32)          # (B*16, 112)

    # conv3: depthwise (1,16) -> 16-tap in-register FMA loop (no VMEM scratch).
    c3 = w3_ref[:, 0:1] * p1p[:, 0:T3]
    for k in range(1, 16):
        c3 = c3 + w3_ref[:, k:k + 1] * p1p[:, k:k + T3]        # (B*16, 97)

    # conv4 (1x1) with bn3 folded into the block-diagonal weight, then ELU.
    c4 = jnp.dot(w4_ref[...], c3,
                 preferred_element_type=jnp.float32) + b3_ref[...]
    c4 = elu(c4)                                               # (B*16, 97)

    # avgpool2 + flatten + NormLinear folded into per-class matrices D:
    #   y[b, j] = sum_{o,u} c4[b*16+o, u] * D[j, b*16+o, u] + bias[j]
    r0 = jnp.sum(c4 * d_ref[0], axis=1, keepdims=True)         # (B*16, 1)
    r1 = jnp.sum(c4 * d_ref[1], axis=1, keepdims=True)         # (B*16, 1)
    r = jnp.concatenate([r0, r1], axis=1)                      # (B*16, 2)
    y = jnp.dot(sel_ref[...], r,
                preferred_element_type=jnp.float32) + bd_ref[...]   # (B, 2)

    logit_ref[...] = y
    m = jnp.max(y, axis=1, keepdims=True)
    e = jnp.exp(y - m)
    prob_ref[...] = e / jnp.sum(e, axis=1, keepdims=True)


# ============================ parameter prep ============================

def init_params(key):
    ks = jax.random.split(key, 8)

    def bn_init(k, c):
        k1, k2, k3, k4 = jax.random.split(k, 4)
        gamma = 1.0 + 0.1 * jax.random.normal(k1, (c,), jnp.float32)
        beta = 0.1 * jax.random.normal(k2, (c,), jnp.float32)
        mean = 0.1 * jax.random.normal(k3, (c,), jnp.float32)
        var = 1.0 + 0.1 * jnp.abs(jax.random.normal(k4, (c,), jnp.float32))
        return (gamma, beta, mean, var)

    return {
        'conv1': 0.10 * jax.random.normal(ks[0], (8, 1, 1, 64), jnp.float32),
        'bn1': bn_init(ks[1], 8),
        'conv2': 0.30 * jax.random.normal(ks[2], (16, 1, 3, 1), jnp.float32),
        'bn2': bn_init(ks[3], 16),
        'conv3': 0.15 * jax.random.normal(ks[4], (16, 1, 1, 16), jnp.float32),
        'conv4': 0.25 * jax.random.normal(ks[5], (16, 16, 1, 1), jnp.float32),
        'bn3': bn_init(ks[6], 16),
        'dense_w': jax.random.normal(ks[7], (2, FEAT), jnp.float32),
        'dense_b': jnp.zeros((2,), jnp.float32),
    }


def prepare_kernel_params(p, batch):
    """Fold BN/pooling/NormLinear into kernel-friendly fused weights."""
    eps = 1e-5

    def fuse_bn(gamma, beta, mean, var):
        scale = gamma / jnp.sqrt(var + eps)
        return scale, beta - mean * scale

    s1, sh1 = fuse_bn(*p['bn1'])          # (8,)
    s2, sh2 = fuse_bn(*p['bn2'])          # (16,)
    s3, sh3 = fuse_bn(*p['bn3'])          # (16,)

    w1 = p['conv1'][:, 0, 0, :]           # (8, 64)
    w2 = p['conv2'][:, 0, :, 0]           # (16, 3)
    w3 = p['conv3'][:, 0, 0, :]           # (16, 16)
    w4 = p['conv4'][:, :, 0, 0]           # (16, 16)

    # conv2 (grouped, 8 groups) output channel o uses conv1 channel o//2.
    grp = jnp.arange(16) // 2
    # Fused conv1+bn1+conv2+bn2 weight: Wf[o, h*64+k] = s2*w2[o,h]*s1*w1[o//2,k]
    wf = (s2[:, None, None] * w2[:, :, None]
          * s1[grp][:, None, None] * w1[grp][:, None, :])      # (16, 3, 64)
    wf = wf.reshape(16, K1)
    bc = s2 * sh1[grp] * jnp.sum(w2, axis=1) + sh2             # (16,)

    eye_b = jnp.eye(batch, dtype=jnp.float32)
    wbd = jnp.kron(eye_b, wf).astype(jnp.bfloat16)             # (16B, 192B)
    bcs = jnp.tile(bc, batch)[:, None]                         # (16B, 1)

    def pool_matrix(width_in, win):
        n = width_in // win                # floor pooling (PyTorch semantics)
        t = jnp.arange(width_in)[:, None]
        j = jnp.arange(n)[None, :]
        return jnp.where((t >= j * win) & (t < (j + 1) * win),
                         1.0 / win, 0.0).astype(jnp.float32)

    # pool1 with the conv3 padding (8 zero columns each side) baked in.
    pool1 = pool_matrix(T1, 4)                                 # (385, 96)
    pool1p = jnp.zeros((T1, PADW), jnp.float32)
    pool1p = pool1p.at[:, 8:8 + P1_W].set(pool1).astype(jnp.bfloat16)

    pool2 = pool_matrix(T3, 8)                                 # (97, 12)

    w3s = jnp.tile(w3, (batch, 1))                             # (16B, 16)
    w4f = jnp.kron(eye_b, s3[:, None] * w4)                    # (16B, 16B)
    b3s = jnp.tile(sh3, batch)[:, None]                        # (16B, 1)

    # NormLinear: renormalize each row to L2 norm 0.25 (as done every forward),
    # then fold avgpool2 + flatten into per-class reduction matrices D.
    wd = p['dense_w']
    wdn = wd * (0.25 / (jnp.linalg.norm(wd, axis=1, keepdims=True) + 1e-6))
    wr = wdn.reshape(2, 16, P2_W)
    dbase = jnp.einsum('jot,ut->jou', wr, pool2)               # (2, 16, 97)
    d = jnp.tile(dbase, (1, batch, 1))                         # (2, 16B, 97)

    sel = jnp.kron(eye_b, jnp.ones((1, 16), jnp.float32))      # (B, 16B)
    bd = p['dense_b'][None, :]                                 # (1, 2)

    return {'wbd': wbd, 'bc': bcs, 'pool1': pool1p, 'w3': w3s, 'w4': w4f,
            'b3': b3s, 'd': d, 'sel': sel, 'bd': bd}


# ============================ JAX wrapper ============================

@jax.jit
def eeg_forward(x, kp):
    bsz = x.shape[0]
    # pad time axis for conv1 and build the im2col patch slab:
    #   pst[b*192 + h*64 + k, t] = xpad[b, h, t + k]
    xpad = jnp.pad(x[:, 0, :, :], ((0, 0), (0, 0), (32, 32)))   # (B, 3, 448)
    idx = jnp.arange(64)[:, None] + jnp.arange(T1)[None, :]     # (64, 385)
    patches = jnp.take(xpad, idx, axis=2)                       # (B, 3, 64, 385)
    pst = patches.reshape(bsz * K1, T1).astype(jnp.bfloat16)    # (192B, 385)

    logits, probs = pl.pallas_call(
        _eeg_kernel,
        out_shape=(jax.ShapeDtypeStruct((bsz, 2), jnp.float32),
                   jax.ShapeDtypeStruct((bsz, 2), jnp.float32)),
    )(pst, kp['wbd'], kp['bc'], kp['pool1'], kp['w3'], kp['w4'],
      kp['b3'], kp['d'], kp['sel'], kp['bd'])
    return logits, probs


# ============================ pure-JAX reference ============================

def eeg_reference(x, p):
    dn = ('NCHW', 'OIHW', 'NCHW')
    hp = lax.Precision.HIGHEST
    eps = 1e-5

    def bn(o, g, b, m, v):
        return ((o - m[None, :, None, None])
                / jnp.sqrt(v[None, :, None, None] + eps)
                * g[None, :, None, None] + b[None, :, None, None])

    def elu(o):
        return jnp.where(o > 0, o, jnp.exp(o) - 1.0)

    def avg_pool_w(o, w):
        n = (o.shape[-1] // w) * w
        return o[..., :n].reshape(o.shape[:-1] + (n // w, w)).mean(-1)

    o = lax.conv_general_dilated(x, p['conv1'], (1, 1), [(0, 0), (32, 32)],
                                 dimension_numbers=dn, precision=hp)
    o = bn(o, *p['bn1'])
    o = lax.conv_general_dilated(o, p['conv2'], (1, 1), [(0, 0), (0, 0)],
                                 dimension_numbers=dn, feature_group_count=8,
                                 precision=hp)
    o = elu(bn(o, *p['bn2']))
    o = avg_pool_w(o, 4)
    o = lax.conv_general_dilated(o, p['conv3'], (1, 1), [(0, 0), (8, 8)],
                                 dimension_numbers=dn, feature_group_count=16,
                                 precision=hp)
    o = lax.conv_general_dilated(o, p['conv4'], (1, 1), [(0, 0), (0, 0)],
                                 dimension_numbers=dn, precision=hp)
    o = elu(bn(o, *p['bn3']))
    o = avg_pool_w(o, 8)
    o = o.reshape(x.shape[0], -1)
    wd = p['dense_w']
    wdn = wd * (0.25 / (jnp.linalg.norm(wd, axis=1, keepdims=True) + 1e-6))
    y = jnp.dot(o, wdn.T, precision=hp) + p['dense_b']
    return y, jax.nn.softmax(y, axis=1)


# ============================ main ============================

if __name__ == "__main__":
    key = jax.random.PRNGKey(0)
    kx, kparam = jax.random.split(key)
    x = jax.random.normal(kx, (B, 1, C_EEG, T), jnp.float32)

    params = init_params(kparam)
    kparams = prepare_kernel_params(params, B)

    logits, probs = eeg_forward(x, kparams)
    logits, probs = jax.block_until_ready((logits, probs))

    ref_logits, ref_probs = eeg_reference(x, params)
    np.testing.assert_allclose(np.asarray(logits), np.asarray(ref_logits),
                               rtol=5e-2, atol=5e-2)
    np.testing.assert_allclose(np.asarray(probs), np.asarray(ref_probs),
                               rtol=5e-2, atol=5e-2)

    print("KERNEL_OK")
</pallas_src>

<mosaic_0001>
module attributes {stable_mosaic.version = 11 : i64} {
  func.func @_eeg_kernel(%arg0: memref<384x385xbf16, #tpu.memory_space<vmem>>, %arg1: memref<32x384xbf16, #tpu.memory_space<vmem>>, %arg2: memref<32x1xf32, #tpu.memory_space<vmem>>, %arg3: memref<385x112xbf16, #tpu.memory_space<vmem>>, %arg4: memref<32x16xf32, #tpu.memory_space<vmem>>, %arg5: memref<32x32xf32, #tpu.memory_space<vmem>>, %arg6: memref<32x1xf32, #tpu.memory_space<vmem>>, %arg7: memref<2x32x97xf32, #tpu.memory_space<vmem>>, %arg8: memref<2x32xf32, #tpu.memory_space<vmem>>, %arg9: memref<1x2xf32, #tpu.memory_space<vmem>>, %arg10: memref<2x2xf32, #tpu.memory_space<vmem>>, %arg11: memref<2x2xf32, #tpu.memory_space<vmem>>) attributes {dimension_semantics = [], scalar_prefetch = 0 : i64, scratch_operands = 0 : i64, tpu.core_type = #tpu.core_type<tc>} {
    %c0 = arith.constant 0 : index
    %c0_0 = arith.constant 0 : index
    %0 = vector.load %arg1[%c0, %c0_0] : memref<32x384xbf16, #tpu.memory_space<vmem>>, vector<32x384xbf16>
    %c0_1 = arith.constant 0 : index
    %c0_2 = arith.constant 0 : index
    %1 = vector.load %arg0[%c0_1, %c0_2] : memref<384x385xbf16, #tpu.memory_space<vmem>>, vector<384x385xbf16>
    %cst = arith.constant dense<0.000000e+00> : vector<32x385xf32>
    %2 = tpu.matmul %0, %1, %cst {dimension_numbers = #tpu.dot_dimension_numbers<[1], [0], [0], [1], [0, 0, 1, 1], [], []>} : vector<32x384xbf16>, vector<384x385xbf16>, vector<32x385xf32> -> vector<32x385xf32>
    %c0_3 = arith.constant 0 : index
    %c0_4 = arith.constant 0 : index
    %3 = vector.load %arg2[%c0_3, %c0_4] : memref<32x1xf32, #tpu.memory_space<vmem>>, vector<32x1xf32>
    %4 = vector.broadcast %3 : vector<32x1xf32> to vector<32x385xf32>
    %5 = arith.addf %2, %4 : vector<32x385xf32>
    %cst_5 = arith.constant 0.000000e+00 : f32
    %6 = vector.broadcast %cst_5 : f32 to vector<32x385xf32>
    %7 = arith.cmpf ogt, %5, %6 : vector<32x385xf32>
    %cst_6 = arith.constant 0.000000e+00 : f32
    %8 = vector.broadcast %cst_6 : f32 to vector<32x385xf32>
    %9 = arith.minimumf %5, %8 : vector<32x385xf32>
    %10 = math.exp %9 : vector<32x385xf32>
    %cst_7 = arith.constant 1.000000e+00 : f32
    %11 = vector.broadcast %cst_7 : f32 to vector<32x385xf32>
    %12 = arith.subf %10, %11 : vector<32x385xf32>
    %13 = arith.select %7, %5, %12 : vector<32x385xi1>, vector<32x385xf32>
    %14 = arith.truncf %13 : vector<32x385xf32> to vector<32x385xbf16>
    %c0_8 = arith.constant 0 : index
    %c0_9 = arith.constant 0 : index
    %15 = vector.load %arg3[%c0_8, %c0_9] : memref<385x112xbf16, #tpu.memory_space<vmem>>, vector<385x112xbf16>
    %cst_10 = arith.constant dense<0.000000e+00> : vector<32x112xf32>
    %16 = tpu.matmul %14, %15, %cst_10 {dimension_numbers = #tpu.dot_dimension_numbers<[1], [0], [0], [1], [0, 0, 1, 1], [], []>} : vector<32x385xbf16>, vector<385x112xbf16>, vector<32x112xf32> -> vector<32x112xf32>
    %c0_11 = arith.constant 0 : index
    %c0_12 = arith.constant 0 : index
    %17 = vector.load %arg4[%c0_11, %c0_12] : memref<32x16xf32, #tpu.memory_space<vmem>>, vector<32x1xf32>
    %18 = vector.extract_strided_slice %16 {offsets = [0, 0], sizes = [32, 97], strides = [1, 1]} : vector<32x112xf32> to vector<32x97xf32>
    %19 = vector.broadcast %17 : vector<32x1xf32> to vector<32x97xf32>
    %20 = arith.mulf %19, %18 : vector<32x97xf32>
    %c0_13 = arith.constant 0 : index
    %c1 = arith.constant 1 : index
    %21 = vector.load %arg4[%c0_13, %c1] : memref<32x16xf32, #tpu.memory_space<vmem>>, vector<32x1xf32>
    %22 = vector.extract_strided_slice %16 {offsets = [0, 1], sizes = [32, 97], strides = [1, 1]} : vector<32x112xf32> to vector<32x97xf32>
    %23 = vector.broadcast %21 : vector<32x1xf32> to vector<32x97xf32>
    %24 = arith.mulf %23, %22 : vector<32x97xf32>
    %25 = arith.addf %20, %24 : vector<32x97xf32>
    %c0_14 = arith.constant 0 : index
    %c2 = arith.constant 2 : index
    %26 = vector.load %arg4[%c0_14, %c2] : memref<32x16xf32, #tpu.memory_space<vmem>>, vector<32x1xf32>
    %27 = vector.extract_strided_slice %16 {offsets = [0, 2], sizes = [32, 97], strides = [1, 1]} : vector<32x112xf32> to vector<32x97xf32>
    %28 = vector.broadcast %26 : vector<32x1xf32> to vector<32x97xf32>
    %29 = arith.mulf %28, %27 : vector<32x97xf32>
    %30 = arith.addf %25, %29 : vector<32x97xf32>
    %c0_15 = arith.constant 0 : index
    %c3 = arith.constant 3 : index
    %31 = vector.load %arg4[%c0_15, %c3] : memref<32x16xf32, #tpu.memory_space<vmem>>, vector<32x1xf32>
    %32 = vector.extract_strided_slice %16 {offsets = [0, 3], sizes = [32, 97], strides = [1, 1]} : vector<32x112xf32> to vector<32x97xf32>
    %33 = vector.broadcast %31 : vector<32x1xf32> to vector<32x97xf32>
    %34 = arith.mulf %33, %32 : vector<32x97xf32>
    %35 = arith.addf %30, %34 : vector<32x97xf32>
    %c0_16 = arith.constant 0 : index
    %c4 = arith.constant 4 : index
    %36 = vector.load %arg4[%c0_16, %c4] : memref<32x16xf32, #tpu.memory_space<vmem>>, vector<32x1xf32>
    %37 = vector.extract_strided_slice %16 {offsets = [0, 4], sizes = [32, 97], strides = [1, 1]} : vector<32x112xf32> to vector<32x97xf32>
    %38 = vector.broadcast %36 : vector<32x1xf32> to vector<32x97xf32>
    %39 = arith.mulf %38, %37 : vector<32x97xf32>
    %40 = arith.addf %35, %39 : vector<32x97xf32>
    %c0_17 = arith.constant 0 : index
    %c5 = arith.constant 5 : index
    %41 = vector.load %arg4[%c0_17, %c5] : memref<32x16xf32, #tpu.memory_space<vmem>>, vector<32x1xf32>
    %42 = vector.extract_strided_slice %16 {offsets = [0, 5], sizes = [32, 97], strides = [1, 1]} : vector<32x112xf32> to vector<32x97xf32>
    %43 = vector.broadcast %41 : vector<32x1xf32> to vector<32x97xf32>
    %44 = arith.mulf %43, %42 : vector<32x97xf32>
    %45 = arith.addf %40, %44 : vector<32x97xf32>
    %c0_18 = arith.constant 0 : index
    %c6 = arith.constant 6 : index
    %46 = vector.load %arg4[%c0_18, %c6] : memref<32x16xf32, #tpu.memory_space<vmem>>, vector<32x1xf32>
    %47 = vector.extract_strided_slice %16 {offsets = [0, 6], sizes = [32, 97], strides = [1, 1]} : vector<32x112xf32> to vector<32x97xf32>
    %48 = vector.broadcast %46 : vector<32x1xf32> to vector<32x97xf32>
    %49 = arith.mulf %48, %47 : vector<32x97xf32>
    %50 = arith.addf %45, %49 : vector<32x97xf32>
    %c0_19 = arith.constant 0 : index
    %c7 = arith.constant 7 : index
    %51 = vector.load %arg4[%c0_19, %c7] : memref<32x16xf32, #tpu.memory_space<vmem>>, vector<32x1xf32>
    %52 = vector.extract_strided_slice %16 {offsets = [0, 7], sizes = [32, 97], strides = [1, 1]} : vector<32x112xf32> to vector<32x97xf32>
    %53 = vector.broadcast %51 : vector<32x1xf32> to vector<32x97xf32>
    %54 = arith.mulf %53, %52 : vector<32x97xf32>
    %55 = arith.addf %50, %54 : vector<32x97xf32>
    %c0_20 = arith.constant 0 : index
    %c8 = arith.constant 8 : index
    %56 = vector.load %arg4[%c0_20, %c8] : memref<32x16xf32, #tpu.memory_space<vmem>>, vector<32x1xf32>
    %57 = vector.extract_strided_slice %16 {offsets = [0, 8], sizes = [32, 97], strides = [1, 1]} : vector<32x112xf32> to vector<32x97xf32>
    %58 = vector.broadcast %56 : vector<32x1xf32> to vector<32x97xf32>
    %59 = arith.mulf %58, %57 : vector<32x97xf32>
    %60 = arith.addf %55, %59 : vector<32x97xf32>
    %c0_21 = arith.constant 0 : index
    %c9 = arith.constant 9 : index
    %61 = vector.load %arg4[%c0_21, %c9] : memref<32x16xf32, #tpu.memory_space<vmem>>, vector<32x1xf32>
    %62 = vector.extract_strided_slice %16 {offsets = [0, 9], sizes = [32, 97], strides = [1, 1]} : vector<32x112xf32> to vector<32x97xf32>
    %63 = vector.broadcast %61 : vector<32x1xf32> to vector<32x97xf32>
    %64 = arith.mulf %63, %62 : vector<32x97xf32>
    %65 = arith.addf %60, %64 : vector<32x97xf32>
    %c0_22 = arith.constant 0 : index
    %c10 = arith.constant 10 : index
    %66 = vector.load %arg4[%c0_22, %c10] : memref<32x16xf32, #tpu.memory_space<vmem>>, vector<32x1xf32>
    %67 = vector.extract_strided_slice %16 {offsets = [0, 10], sizes = [32, 97], strides = [1, 1]} : vector<32x112xf32> to vector<32x97xf32>
    %68 = vector.broadcast %66 : vector<32x1xf32> to vector<32x97xf32>
    %69 = arith.mulf %68, %67 : vector<32x97xf32>
    %70 = arith.addf %65, %69 : vector<32x97xf32>
    %c0_23 = arith.constant 0 : index
    %c11 = arith.constant 11 : index
    %71 = vector.load %arg4[%c0_23, %c11] : memref<32x16xf32, #tpu.memory_space<vmem>>, vector<32x1xf32>
    %72 = vector.extract_strided_slice %16 {offsets = [0, 11], sizes = [32, 97], strides = [1, 1]} : vector<32x112xf32> to vector<32x97xf32>
    %73 = vector.broadcast %71 : vector<32x1xf32> to vector<32x97xf32>
    %74 = arith.mulf %73, %72 : vector<32x97xf32>
    %75 = arith.addf %70, %74 : vector<32x97xf32>
    %c0_24 = arith.constant 0 : index
    %c12 = arith.constant 12 : index
    %76 = vector.load %arg4[%c0_24, %c12] : memref<32x16xf32, #tpu.memory_space<vmem>>, vector<32x1xf32>
    %77 = vector.extract_strided_slice %16 {offsets = [0, 12], sizes = [32, 97], strides = [1, 1]} : vector<32x112xf32> to vector<32x97xf32>
    %78 = vector.broadcast %76 : vector<32x1xf32> to vector<32x97xf32>
    %79 = arith.mulf %78, %77 : vector<32x97xf32>
    %80 = arith.addf %75, %79 : vector<32x97xf32>
    %c0_25 = arith.constant 0 : index
    %c13 = arith.constant 13 : index
    %81 = vector.load %arg4[%c0_25, %c13] : memref<32x16xf32, #tpu.memory_space<vmem>>, vector<32x1xf32>
    %82 = vector.extract_strided_slice %16 {offsets = [0, 13], sizes = [32, 97], strides = [1, 1]} : vector<32x112xf32> to vector<32x97xf32>
    %83 = vector.broadcast %81 : vector<32x1xf32> to vector<32x97xf32>
    %84 = arith.mulf %83, %82 : vector<32x97xf32>
    %85 = arith.addf %80, %84 : vector<32x97xf32>
    %c0_26 = arith.constant 0 : index
    %c14 = arith.constant 14 : index
    %86 = vector.load %arg4[%c0_26, %c14] : memref<32x16xf32, #tpu.memory_space<vmem>>, vector<32x1xf32>
    %87 = vector.extract_strided_slice %16 {offsets = [0, 14], sizes = [32, 97], strides = [1, 1]} : vector<32x112xf32> to vector<32x97xf32>
    %88 = vector.broadcast %86 : vector<32x1xf32> to vector<32x97xf32>
    %89 = arith.mulf %88, %87 : vector<32x97xf32>
    %90 = arith.addf %85, %89 : vector<32x97xf32>
    %c0_27 = arith.constant 0 : index
    %c15 = arith.constant 15 : index
    %91 = vector.load %arg4[%c0_27, %c15] : memref<32x16xf32, #tpu.memory_space<vmem>>, vector<32x1xf32>
    %92 = vector.extract_strided_slice %16 {offsets = [0, 15], sizes = [32, 97], strides = [1, 1]} : vector<32x112xf32> to vector<32x97xf32>
    %93 = vector.broadcast %91 : vector<32x1xf32> to vector<32x97xf32>
    %94 = arith.mulf %93, %92 : vector<32x97xf32>
    %95 = arith.addf %90, %94 : vector<32x97xf32>
    %c0_28 = arith.constant 0 : index
    %c0_29 = arith.constant 0 : index
    %96 = vector.load %arg5[%c0_28, %c0_29] : memref<32x32xf32, #tpu.memory_space<vmem>>, vector<32x32xf32>
    %cst_30 = arith.constant dense<0.000000e+00> : vector<32x97xf32>
    %97 = tpu.matmul %96, %95, %cst_30 {dimension_numbers = #tpu.dot_dimension_numbers<[1], [0], [0], [1], [0, 0, 1, 1], [], []>} : vector<32x32xf32>, vector<32x97xf32>, vector<32x97xf32> -> vector<32x97xf32>
    %c0_31 = arith.constant 0 : index
    %c0_32 = arith.constant 0 : index
    %98 = vector.load %arg6[%c0_31, %c0_32] : memref<32x1xf32, #tpu.memory_space<vmem>>, vector<32x1xf32>
    %99 = vector.broadcast %98 : vector<32x1xf32> to vector<32x97xf32>
    %100 = arith.addf %97, %99 : vector<32x97xf32>
    %cst_33 = arith.constant 0.000000e+00 : f32
    %101 = vector.broadcast %cst_33 : f32 to vector<32x97xf32>
    %102 = arith.cmpf ogt, %100, %101 : vector<32x97xf32>
    %cst_34 = arith.constant 0.000000e+00 : f32
    %103 = vector.broadcast %cst_34 : f32 to vector<32x97xf32>
    %104 = arith.minimumf %100, %103 : vector<32x97xf32>
    %105 = math.exp %104 : vector<32x97xf32>
    %cst_35 = arith.constant 1.000000e+00 : f32
    %106 = vector.broadcast %cst_35 : f32 to vector<32x97xf32>
    %107 = arith.subf %105, %106 : vector<32x97xf32>
    %108 = arith.select %102, %100, %107 : vector<32x97xi1>, vector<32x97xf32>
    %c0_36 = arith.constant 0 : index
    %c0_37 = arith.constant 0 : index
    %c0_38 = arith.constant 0 : index
    %109 = vector.load %arg7[%c0_36, %c0_37, %c0_38] : memref<2x32x97xf32, #tpu.memory_space<vmem>>, vector<1x32x97xf32>
    %110 = vector.shape_cast %109 : vector<1x32x97xf32> to vector<32x97xf32>
    %111 = arith.mulf %108, %110 : vector<32x97xf32>
    %cst_39 = arith.constant dense<0.000000e+00> : vector<32xf32>
    %112 = vector.multi_reduction <add>, %111, %cst_39 [1] : vector<32x97xf32> to vector<32xf32>
    %113 = vector.shape_cast %112 : vector<32xf32> to vector<32x1xf32>
    %c1_40 = arith.constant 1 : index
    %c0_41 = arith.constant 0 : index
    %c0_42 = arith.constant 0 : index
    %114 = vector.load %arg7[%c1_40, %c0_41, %c0_42] : memref<2x32x97xf32, #tpu.memory_space<vmem>>, vector<1x32x97xf32>
    %115 = vector.shape_cast %114 : vector<1x32x97xf32> to vector<32x97xf32>
    %116 = arith.mulf %108, %115 : vector<32x97xf32>
    %cst_43 = arith.constant dense<0.000000e+00> : vector<32xf32>
    %117 = vector.multi_reduction <add>, %116, %cst_43 [1] : vector<32x97xf32> to vector<32xf32>
    %118 = vector.shape_cast %117 : vector<32xf32> to vector<32x1xf32>
    %119 = tpu.concatenate %113, %118 in 1 : vector<32x1xf32>, vector<32x1xf32> -> vector<32x2xf32>
    %c0_44 = arith.constant 0 : index
    %c0_45 = arith.constant 0 : index
    %120 = vector.load %arg8[%c0_44, %c0_45] : memref<2x32xf32, #tpu.memory_space<vmem>>, vector<2x32xf32>
    %cst_46 = arith.constant dense<0.000000e+00> : vector<2x2xf32>
    %121 = tpu.matmul %120, %119, %cst_46 {dimension_numbers = #tpu.dot_dimension_numbers<[1], [0], [0], [1], [0, 0, 1, 1], [], []>} : vector<2x32xf32>, vector<32x2xf32>, vector<2x2xf32> -> vector<2x2xf32>
    %c0_47 = arith.constant 0 : index
    %c0_48 = arith.constant 0 : index
    %122 = vector.load %arg9[%c0_47, %c0_48] : memref<1x2xf32, #tpu.memory_space<vmem>>, vector<1x2xf32>
    %123 = vector.broadcast %122 : vector<1x2xf32> to vector<2x2xf32>
    %124 = arith.addf %121, %123 : vector<2x2xf32>
    %c0_49 = arith.constant 0 : index
    %c0_50 = arith.constant 0 : index
    %125 = vector.load %arg10[%c0_49, %c0_50] : memref<2x2xf32, #tpu.memory_space<vmem>>, vector<2x2xf32>
    tpu.vector_store %arg10[%c0_49, %c0_50], %124 {strides = array<i32>} : memref<2x2xf32, #tpu.memory_space<vmem>>, vector<2x2xf32>,
    %cst_51 = arith.constant dense<0xFF800000> : vector<2xf32>
    %126 = vector.multi_reduction <maximumf>, %124, %cst_51 [1] : vector<2x2xf32> to vector<2xf32>
    %127 = vector.shape_cast %126 : vector<2xf32> to vector<2x1xf32>
    %128 = vector.broadcast %127 : vector<2x1xf32> to vector<2x2xf32>
    %129 = arith.subf %124, %128 : vector<2x2xf32>
    %130 = math.exp %129 : vector<2x2xf32>
    %cst_52 = arith.constant dense<0.000000e+00> : vector<2xf32>
    %131 = vector.multi_reduction <add>, %130, %cst_52 [1] : vector<2x2xf32> to vector<2xf32>
    %132 = vector.shape_cast %131 : vector<2xf32> to vector<2x1xf32>
    %133 = vector.broadcast %132 : vector<2x1xf32> to vector<2x2xf32>
    %134 = arith.divf %130, %133 : vector<2x2xf32>
    %c0_53 = arith.constant 0 : index
    %c0_54 = arith.constant 0 : index
    %135 = vector.load %arg11[%c0_53, %c0_54] : memref<2x2xf32, #tpu.memory_space<vmem>>, vector<2x2xf32>
    tpu.vector_store %arg11[%c0_53, %c0_54], %134 {strides = array<i32>} : memref<2x2xf32, #tpu.memory_space<vmem>>, vector<2x2xf32>,
    return
  }
}

</mosaic_0001>

<llo_original>
// kernel: eeg_forward.1
$region0: #{eeg_forward.1}
  #allocation0 [shape = 'u32[]', space=smem, size = 0x4, offset = 0x4, fixed_abs, tag = 'smem constant byte address 0x4 - core index']
  #allocation1 [shape = 'u32[72,128]{1,0:T(1,128)}', space=vmem, size = 0x9000, scoped, tag = 'internal scratch']
  %s0 = inlined_call_operand.vmem [shape: bf16[384,385], index: 0, kind: input, shape index: {}]
  %s1 = inlined_call_operand.vmem [shape: bf16[32,384], index: 1, kind: input, shape index: {}]
  %s2 = inlined_call_operand.vmem [shape: f32[32,1], index: 2, kind: input, shape index: {}]
  %s3 = inlined_call_operand.vmem [shape: bf16[385,112], index: 3, kind: input, shape index: {}]
  %s4 = inlined_call_operand.vmem [shape: f32[32,16], index: 4, kind: input, shape index: {}]
  %s5 = inlined_call_operand.vmem [shape: f32[32,32], index: 5, kind: input, shape index: {}]
  %s6 = inlined_call_operand.vmem [shape: f32[32,1], index: 6, kind: input, shape index: {}]
  %s7 = inlined_call_operand.vmem [shape: f32[2,32,97], index: 7, kind: input, shape index: {}]
  %s8 = inlined_call_operand.vmem [shape: f32[2,32], index: 8, kind: input, shape index: {}]
  %s9 = inlined_call_operand.vmem [shape: f32[1,2], index: 9, kind: input, shape index: {}]
  %s10 = inlined_call_operand.hbm [shape: f32[2,2], index: 10, kind: output, shape index: {0}]
  %s11 = inlined_call_operand.hbm [shape: f32[2,2], index: 11, kind: output, shape index: {1}]
  %12 = xla_tuple %s10, %s11
  %s13 = sld [smem:[#allocation0]]
  $region58: #{eeg_forward.1} parent=0
    _
  %s15 = ssub.s32 1, %s13
  %s16 = scalar_select 0, %s15, %s13
  $region1: #{eeg_forward.1} parent=0
    #allocation2 [shape = 'u8[1024]{0}', space=vmem, size = 0x400, scoped, tag = 'output window, operand 0, single buffered']
    #allocation3 [shape = 's32[1]{0}', space=sflag, size = 0x4, scoped, tag = 'scoped memory for eeg_forward.1']
    #allocation4 [shape = 'u8[1024]{0}', space=vmem, size = 0x400, scoped, tag = 'output window, operand 1, single buffered']
    #allocation5 [shape = 's32[1]{0}', space=sflag, size = 0x4, scoped, tag = 'scoped memory for eeg_forward.1']
    %17 = vsyncpa [#allocation3], 0
    %18 = vsyncpa [#allocation5], 0
    // Predicated region
    $region2: #{eeg_forward.1} parent=1 // pred_check
      _
    $region3: #{eeg_forward.1} parent=1 // pred_check_branch
      %20 = sbr.rel (0) target = $region5
    $region4: #{eeg_forward.1} parent=1 // pred_region
      _
    $region5: #{eeg_forward.1} parent=1 // pred_fallthru
      _
    // Predicated region
    $region6: #{eeg_forward.1} parent=1 // pred_check
      _
    $region7: #{eeg_forward.1} parent=1 // pred_check_branch
      %22 = sbr.rel (0) target = $region9
    $region8: #{eeg_forward.1} parent=1 // pred_region
      _
    $region9: #{eeg_forward.1} parent=1 // pred_fallthru
      _
    // Predicated region
    $region10: #{eeg_forward.1} parent=1 // pred_check
      _
    $region11: #{eeg_forward.1} parent=1 // pred_check_branch
      %24 = sbr.rel (0) target = $region13
    $region12: #{eeg_forward.1} parent=1 // pred_region
      _
    $region13: #{eeg_forward.1} parent=1 // pred_fallthru
      _
    // Predicated region
    $region14: #{eeg_forward.1} parent=1 // pred_check
      _
    $region15: #{eeg_forward.1} parent=1 // pred_check_branch
      %26 = sbr.rel (0) target = $region17
    $region16: #{eeg_forward.1} parent=1 // pred_region
      _
    $region17: #{eeg_forward.1} parent=1 // pred_fallthru
      _
    // Predicated region
    $region18: #{eeg_forward.1} parent=1 // pred_check
      _
    $region19: #{eeg_forward.1} parent=1 // pred_check_branch
      %28 = sbr.rel (0) target = $region21
    $region20: #{eeg_forward.1} parent=1 // pred_region
      _
    $region21: #{eeg_forward.1} parent=1 // pred_fallthru
      _
    // Predicated region
    $region22: #{eeg_forward.1} parent=1 // pred_check
      _
    $region23: #{eeg_forward.1} parent=1 // pred_check_branch
      %30 = sbr.rel (0) target = $region25
    $region24: #{eeg_forward.1} parent=1 // pred_region
      _
    $region25: #{eeg_forward.1} parent=1 // pred_fallthru
      _
    // Predicated region
    $region26: #{eeg_forward.1} parent=1 // pred_check
      _
    $region27: #{eeg_forward.1} parent=1 // pred_check_branch
      %32 = sbr.rel (0) target = $region29
    $region28: #{eeg_forward.1} parent=1 // pred_region
      _
    $region29: #{eeg_forward.1} parent=1 // pred_fallthru
      _
    // Predicated region
    $region30: #{eeg_forward.1} parent=1 // pred_check
      _
    $region31: #{eeg_forward.1} parent=1 // pred_check_branch
      %34 = sbr.rel (0) target = $region33
    $region32: #{eeg_forward.1} parent=1 // pred_region
      _
    $region33: #{eeg_forward.1} parent=1 // pred_fallthru
      _
    // Predicated region
    $region34: #{eeg_forward.1} parent=1 // pred_check
      _
    $region35: #{eeg_forward.1} parent=1 // pred_check_branch
      %36 = sbr.rel (0) target = $region37
    $region36: #{eeg_forward.1} parent=1 // pred_region
      _
    $region37: #{eeg_forward.1} parent=1 // pred_fallthru
      _
    // Predicated region
    $region38: #{eeg_forward.1} parent=1 // pred_check
      _
    $region39: #{eeg_forward.1} parent=1 // pred_check_branch
      %38 = sbr.rel (0) target = $region41
    $region40: #{eeg_forward.1} parent=1 // pred_region
      _
    $region41: #{eeg_forward.1} parent=1 // pred_fallthru
      _
    %v40 = vld [vmem:[%s1] sm:$0xff]
    %v41 = vld [vmem:[%s1 + $0x8] sm:$0xf]
    %v42 = vld [vmem:[%s1 + $0xc] sm:$0xff]
    %v43 = vld [vmem:[%s1 + $0x14] sm:$0xf]
    %v44 = vld [vmem:[%s1 + $0x18] sm:$0xff]
    %v45 = vld [vmem:[%s1 + $0x20] sm:$0xf]
    %v46 = vld [vmem:[%s1 + $0x24] sm:$0xff]
    %v47 = vld [vmem:[%s1 + $0x2c] sm:$0xf]
    %v48 = vld [vmem:[%s0] sm:$0xff]
    %v49 = vld [vmem:[%s0 + $0x8] sm:$0xff]
    %v50 = vld [vmem:[%s0 + $0x10] sm:$0xff]
    %v51 = vld [vmem:[%s0 + $0x18] sm:$0xff]
    %v52 = vld [vmem:[%s0 + $0x20] sm:$0xff]
    %v53 = vld [vmem:[%s0 + $0x28] sm:$0xff]
    %v54 = vld [vmem:[%s0 + $0x30] sm:$0xff]
    %v55 = vld [vmem:[%s0 + $0x38] sm:$0xff]
    %v56 = vld [vmem:[%s0 + $0x40] sm:$0xff]
    %v57 = vld [vmem:[%s0 + $0x48] sm:$0xff]
    %v58 = vld [vmem:[%s0 + $0x50] sm:$0xff]
    %v59 = vld [vmem:[%s0 + $0x58] sm:$0xff]
    %v60 = vld [vmem:[%s0 + $0x60] sm:$0xff]
    %v61 = vld [vmem:[%s0 + $0x68] sm:$0xff]
    %v62 = vld [vmem:[%s0 + $0x70] sm:$0xff]
    %v63 = vld [vmem:[%s0 + $0x78] sm:$0xff]
    %v64 = vld [vmem:[%s0 + $0x80] sm:$0xff]
    %v65 = vld [vmem:[%s0 + $0x88] sm:$0xff]
    %v66 = vld [vmem:[%s0 + $0x90] sm:$0xff]
    %v67 = vld [vmem:[%s0 + $0x98] sm:$0xff]
    %v68 = vld [vmem:[%s0 + $0xa0] sm:$0xff]
    %v69 = vld [vmem:[%s0 + $0xa8] sm:$0xff]
    %v70 = vld [vmem:[%s0 + $0xb0] sm:$0xff]
    %v71 = vld [vmem:[%s0 + $0xb8] sm:$0xff]
    %v72 = vld [vmem:[%s0 + $0xc0] sm:$0xff]
    %v73 = vld [vmem:[%s0 + $0xc8] sm:$0xff]
    %v74 = vld [vmem:[%s0 + $0xd0] sm:$0xff]
    %v75 = vld [vmem:[%s0 + $0xd8] sm:$0xff]
    %v76 = vld [vmem:[%s0 + $0xe0] sm:$0xff]
    %v77 = vld [vmem:[%s0 + $0xe8] sm:$0xff]
    %v78 = vld [vmem:[%s0 + $0xf0] sm:$0xff]
    %v79 = vld [vmem:[%s0 + $0xf8] sm:$0xff]
    %v80 = vld [vmem:[%s0 + $0x100] sm:$0xff]
    %v81 = vld [vmem:[%s0 + $0x108] sm:$0xff]
    %v82 = vld [vmem:[%s0 + $0x110] sm:$0xff]
    %v83 = vld [vmem:[%s0 + $0x118] sm:$0xff]
    %v84 = vld [vmem:[%s0 + $0x120] sm:$0xff]
    %v85 = vld [vmem:[%s0 + $0x128] sm:$0xff]
    %v86 = vld [vmem:[%s0 + $0x130] sm:$0xff]
    %v87 = vld [vmem:[%s0 + $0x138] sm:$0xff]
    %v88 = vld [vmem:[%s0 + $0x140] sm:$0xff]
    %v89 = vld [vmem:[%s0 + $0x148] sm:$0xff]
    %v90 = vld [vmem:[%s0 + $0x150] sm:$0xff]
    %v91 = vld [vmem:[%s0 + $0x158] sm:$0xff]
    %v92 = vld [vmem:[%s0 + $0x160] sm:$0xff]
    %v93 = vld [vmem:[%s0 + $0x168] sm:$0xff]
    %v94 = vld [vmem:[%s0 + $0x170] sm:$0xff]
    %v95 = vld [vmem:[%s0 + $0x178] sm:$0xff]
    %v96 = vld [vmem:[%s0 + $0x180] sm:$0xff]
    %v97 = vld [vmem:[%s0 + $0x188] sm:$0xff]
    %v98 = vld [vmem:[%s0 + $0x190] sm:$0xff]
    %v99 = vld [vmem:[%s0 + $0x198] sm:$0xff]
    %v100 = vld [vmem:[%s0 + $0x1a0] sm:$0xff]
    %v101 = vld [vmem:[%s0 + $0x1a8] sm:$0xff]
    %v102 = vld [vmem:[%s0 + $0x1b0] sm:$0xff]
    %v103 = vld [vmem:[%s0 + $0x1b8] sm:$0xff]
    %v104 = vld [vmem:[%s0 + $0x1c0] sm:$0xff]
    %v105 = vld [vmem:[%s0 + $0x1c8] sm:$0xff]
    %v106 = vld [vmem:[%s0 + $0x1d0] sm:$0xff]
    %v107 = vld [vmem:[%s0 + $0x1d8] sm:$0xff]
    %v108 = vld [vmem:[%s0 + $0x1e0] sm:$0xff]
    %v109 = vld [vmem:[%s0 + $0x1e8] sm:$0xff]
    %v110 = vld [vmem:[%s0 + $0x1f0] sm:$0xff]
    %v111 = vld [vmem:[%s0 + $0x1f8] sm:$0xff]
    %v112 = vld [vmem:[%s0 + $0x200] sm:$0xff]
    %v113 = vld [vmem:[%s0 + $0x208] sm:$0xff]
    %v114 = vld [vmem:[%s0 + $0x210] sm:$0xff]
    %v115 = vld [vmem:[%s0 + $0x218] sm:$0xff]
    %v116 = vld [vmem:[%s0 + $0x220] sm:$0xff]
    %v117 = vld [vmem:[%s0 + $0x228] sm:$0xff]
    %v118 = vld [vmem:[%s0 + $0x230] sm:$0xff]
    %v119 = vld [vmem:[%s0 + $0x238] sm:$0xff]
    %v120 = vld [vmem:[%s0 + $0x240] sm:$0xff]
    %v121 = vld [vmem:[%s0 + $0x248] sm:$0xff]
    %v122 = vld [vmem:[%s0 + $0x250] sm:$0xff]
    %v123 = vld [vmem:[%s0 + $0x258] sm:$0xff]
    %v124 = vld [vmem:[%s0 + $0x260] sm:$0xff]
    %v125 = vld [vmem:[%s0 + $0x268] sm:$0xff]
    %v126 = vld [vmem:[%s0 + $0x270] sm:$0xff]
    %v127 = vld [vmem:[%s0 + $0x278] sm:$0xff]
    %v128 = vld [vmem:[%s0 + $0x280] sm:$0xff]
    %v129 = vld [vmem:[%s0 + $0x288] sm:$0xff]
    %v130 = vld [vmem:[%s0 + $0x290] sm:$0xff]
    %v131 = vld [vmem:[%s0 + $0x298] sm:$0xff]
    %v132 = vld [vmem:[%s0 + $0x2a0] sm:$0xff]
    %v133 = vld [vmem:[%s0 + $0x2a8] sm:$0xff]
    %v134 = vld [vmem:[%s0 + $0x2b0] sm:$0xff]
    %v135 = vld [vmem:[%s0 + $0x2b8] sm:$0xff]
    %v136 = vld [vmem:[%s0 + $0x2c0] sm:$0xff]
    %v137 = vld [vmem:[%s0 + $0x2c8] sm:$0xff]
    %v138 = vld [vmem:[%s0 + $0x2d0] sm:$0xff]
    %v139 = vld [vmem:[%s0 + $0x2d8] sm:$0xff]
    %v140 = vld [vmem:[%s0 + $0x2e0] sm:$0xff]
    %v141 = vld [vmem:[%s0 + $0x2e8] sm:$0xff]
    %v142 = vld [vmem:[%s0 + $0x2f0] sm:$0xff]
    %v143 = vld [vmem:[%s0 + $0x2f8] sm:$0xff]
    %v144 = vld [vmem:[%s2] sm:$0xff]
    %v145 = vld [vmem:[%s2 + $0x8] sm:$0xff]
    %v146 = vld [vmem:[%s2 + $0x10] sm:$0xff]
    %v147 = vld [vmem:[%s2 + $0x18] sm:$0xff]
    %149 = vset.pattern.permute.xlu0 0
    %150 = vperm.xlu0 %149, %v144
    %v151 = vpop.permute.xlu0 %150
    %154 = vset.pattern.permute.xlu0 0
    %155 = vperm.xlu0 %154, %v145
    %v156 = vpop.permute.xlu0 %155
    %159 = vset.pattern.permute.xlu0 0
    %160 = vperm.xlu0 %159, %v146
    %v161 = vpop.permute.xlu0 %160
    %164 = vset.pattern.permute.xlu0 0
    %165 = vperm.xlu0 %164, %v147
    %v166 = vpop.permute.xlu0 %165
    %v176 = vunpack.c.l.b16 %v40
    %v177 = vunpack.c.h.b16 %v40
    %v178 = vunpack.c.l.b16 %v41
    %v179 = vunpack.c.l.b16 %v42
    %v180 = vunpack.c.h.b16 %v42
    %v181 = vunpack.c.l.b16 %v43
    %v182 = vunpack.c.l.b16 %v44
    %v183 = vunpack.c.h.b16 %v44
    %v184 = vunpack.c.l.b16 %v45
    %v185 = vunpack.c.l.b16 %v46
    %v186 = vunpack.c.h.b16 %v46
    %v187 = vunpack.c.l.b16 %v47
    %v188 = vpack.c.b16 %v179, %v176
    %v189 = vpack.c.b16 %v180, %v177
    %v190 = vpack.c.b16 %v181, %v178
    %v191 = vpack.c.b16 %v185, %v182
    %v192 = vpack.c.b16 %v186, %v183
    %v193 = vpack.c.b16 %v187, %v184
    %v296 = vunpack.c.l.b16 %v48
    %v297 = vunpack.c.h.b16 %v48
    %v298 = vunpack.c.l.b16 %v49
    %v299 = vunpack.c.h.b16 %v49
    %v300 = vunpack.c.l.b16 %v50
    %v301 = vunpack.c.h.b16 %v50
    %v302 = vunpack.c.l.b16 %v51
    %v303 = vunpack.c.h.b16 %v51
    %v304 = vunpack.c.l.b16 %v52
    %v305 = vunpack.c.h.b16 %v52
    %v306 = vunpack.c.l.b16 %v53
    %v307 = vunpack.c.h.b16 %v53
    %v308 = vunpack.c.l.b16 %v54
    %v309 = vunpack.c.h.b16 %v54
    %v310 = vunpack.c.l.b16 %v55
    %v311 = vunpack.c.h.b16 %v55
    %v312 = vunpack.c.l.b16 %v56
    %v313 = vunpack.c.h.b16 %v56
    %v314 = vunpack.c.l.b16 %v57
    %v315 = vunpack.c.h.b16 %v57
    %v316 = vunpack.c.l.b16 %v58
    %v317 = vunpack.c.h.b16 %v58
    %v318 = vunpack.c.l.b16 %v59
    %v319 = vunpack.c.h.b16 %v59
    %v320 = vunpack.c.l.b16 %v60
    %v321 = vunpack.c.h.b16 %v60
    %v322 = vunpack.c.l.b16 %v61
    %v323 = vunpack.c.h.b16 %v61
    %v324 = vunpack.c.l.b16 %v62
    %v325 = vunpack.c.h.b16 %v62
    %v326 = vunpack.c.l.b16 %v63
    %v327 = vunpack.c.h.b16 %v63
    %v328 = vunpack.c.l.b16 %v64
    %v329 = vunpack.c.h.b16 %v64
    %v330 = vunpack.c.l.b16 %v65
    %v331 = vunpack.c.h.b16 %v65
    %v332 = vunpack.c.l.b16 %v66
    %v333 = vunpack.c.h.b16 %v66
    %v334 = vunpack.c.l.b16 %v67
    %v335 = vunpack.c.h.b16 %v67
    %v336 = vunpack.c.l.b16 %v68
    %v337 = vunpack.c.h.b16 %v68
    %v338 = vunpack.c.l.b16 %v69
    %v339 = vunpack.c.h.b16 %v69
    %v340 = vunpack.c.l.b16 %v70
    %v341 = vunpack.c.h.b16 %v70
    %v342 = vunpack.c.l.b16 %v71
    %v343 = vunpack.c.h.b16 %v71
    %v344 = vunpack.c.l.b16 %v72
    %v345 = vunpack.c.h.b16 %v72
    %v346 = vunpack.c.l.b16 %v73
    %v347 = vunpack.c.h.b16 %v73
    %v348 = vunpack.c.l.b16 %v74
    %v349 = vunpack.c.h.b16 %v74
    %v350 = vunpack.c.l.b16 %v75
    %v351 = vunpack.c.h.b16 %v75
    %v352 = vunpack.c.l.b16 %v76
    %v353 = vunpack.c.h.b16 %v76
    %v354 = vunpack.c.l.b16 %v77
    %v355 = vunpack.c.h.b16 %v77
    %v356 = vunpack.c.l.b16 %v78
    %v357 = vunpack.c.h.b16 %v78
    %v358 = vunpack.c.l.b16 %v79
    %v359 = vunpack.c.h.b16 %v79
    %v360 = vunpack.c.l.b16 %v80
    %v361 = vunpack.c.h.b16 %v80
    %v362 = vunpack.c.l.b16 %v81
    %v363 = vunpack.c.h.b16 %v81
    %v364 = vunpack.c.l.b16 %v82
    %v365 = vunpack.c.h.b16 %v82
    %v366 = vunpack.c.l.b16 %v83
    %v367 = vunpack.c.h.b16 %v83
    %v368 = vunpack.c.l.b16 %v84
    %v369 = vunpack.c.h.b16 %v84
    %v370 = vunpack.c.l.b16 %v85
    %v371 = vunpack.c.h.b16 %v85
    %v372 = vunpack.c.l.b16 %v86
    %v373 = vunpack.c.h.b16 %v86
    %v374 = vunpack.c.l.b16 %v87
    %v375 = vunpack.c.h.b16 %v87
    %v376 = vunpack.c.l.b16 %v88
    %v377 = vunpack.c.h.b16 %v88
    %v378 = vunpack.c.l.b16 %v89
    %v379 = vunpack.c.h.b16 %v89
    %v380 = vunpack.c.l.b16 %v90
    %v381 = vunpack.c.h.b16 %v90
    %v382 = vunpack.c.l.b16 %v91
    %v383 = vunpack.c.h.b16 %v91
    %v384 = vunpack.c.l.b16 %v92
    %v385 = vunpack.c.h.b16 %v92
    %v386 = vunpack.c.l.b16 %v93
    %v387 = vunpack.c.h.b16 %v93
    %v388 = vunpack.c.l.b16 %v94
    %v389 = vunpack.c.h.b16 %v94
    %v390 = vunpack.c.l.b16 %v95
    %v391 = vunpack.c.h.b16 %v95
    %v392 = vunpack.c.l.b16 %v96
    %v393 = vunpack.c.h.b16 %v96
    %v394 = vunpack.c.l.b16 %v97
    %v395 = vunpack.c.h.b16 %v97
    %v396 = vunpack.c.l.b16 %v98
    %v397 = vunpack.c.h.b16 %v98
    %v398 = vunpack.c.l.b16 %v99
    %v399 = vunpack.c.h.b16 %v99
    %v400 = vunpack.c.l.b16 %v100
    %v401 = vunpack.c.h.b16 %v100
    %v402 = vunpack.c.l.b16 %v101
    %v403 = vunpack.c.h.b16 %v101
    %v404 = vunpack.c.l.b16 %v102
    %v405 = vunpack.c.h.b16 %v102
    %v406 = vunpack.c.l.b16 %v103
    %v407 = vunpack.c.h.b16 %v103
    %v408 = vunpack.c.l.b16 %v104
    %v409 = vunpack.c.h.b16 %v104
    %v410 = vunpack.c.l.b16 %v105
    %v411 = vunpack.c.h.b16 %v105
    %v412 = vunpack.c.l.b16 %v106
    %v413 = vunpack.c.h.b16 %v106
    %v414 = vunpack.c.l.b16 %v107
    %v415 = vunpack.c.h.b16 %v107
    %v416 = vunpack.c.l.b16 %v108
    %v417 = vunpack.c.h.b16 %v108
    %v418 = vunpack.c.l.b16 %v109
    %v419 = vunpack.c.h.b16 %v109
    %v420 = vunpack.c.l.b16 %v110
    %v421 = vunpack.c.h.b16 %v110
    %v422 = vunpack.c.l.b16 %v111
    %v423 = vunpack.c.h.b16 %v111
    %v424 = vunpack.c.l.b16 %v112
    %v425 = vunpack.c.h.b16 %v112
    %v426 = vunpack.c.l.b16 %v113
    %v427 = vunpack.c.h.b16 %v113
    %v428 = vunpack.c.l.b16 %v114
    %v429 = vunpack.c.h.b16 %v114
    %v430 = vunpack.c.l.b16 %v115
    %v431 = vunpack.c.h.b16 %v115
    %v432 = vunpack.c.l.b16 %v116
    %v433 = vunpack.c.h.b16 %v116
    %v434 = vunpack.c.l.b16 %v117
    %v435 = vunpack.c.h.b16 %v117
    %v436 = vunpack.c.l.b16 %v118
    %v437 = vunpack.c.h.b16 %v118
    %v438 = vunpack.c.l.b16 %v119
    %v439 = vunpack.c.h.b16 %v119
    %v440 = vunpack.c.l.b16 %v120
    %v441 = vunpack.c.h.b16 %v120
    %v442 = vunpack.c.l.b16 %v121
    %v443 = vunpack.c.h.b16 %v121
    %v444 = vunpack.c.l.b16 %v122
    %v445 = vunpack.c.h.b16 %v122
    %v446 = vunpack.c.l.b16 %v123
    %v447 = vunpack.c.h.b16 %v123
    %v448 = vunpack.c.l.b16 %v124
    %v449 = vunpack.c.h.b16 %v124
    %v450 = vunpack.c.l.b16 %v125
    %v451 = vunpack.c.h.b16 %v125
    %v452 = vunpack.c.l.b16 %v126
    %v453 = vunpack.c.h.b16 %v126
    %v454 = vunpack.c.l.b16 %v127
    %v455 = vunpack.c.h.b16 %v127
    %v456 = vunpack.c.l.b16 %v128
    %v457 = vunpack.c.h.b16 %v128
    %v458 = vunpack.c.l.b16 %v129
    %v459 = vunpack.c.h.b16 %v129
    %v460 = vunpack.c.l.b16 %v130
    %v461 = vunpack.c.h.b16 %v130
    %v462 = vunpack.c.l.b16 %v131
    %v463 = vunpack.c.h.b16 %v131
    %v464 = vunpack.c.l.b16 %v132
    %v465 = vunpack.c.h.b16 %v132
    %v466 = vunpack.c.l.b16 %v133
    %v467 = vunpack.c.h.b16 %v133
    %v468 = vunpack.c.l.b16 %v134
    %v469 = vunpack.c.h.b16 %v134
    %v470 = vunpack.c.l.b16 %v135
    %v471 = vunpack.c.h.b16 %v135
    %v472 = vunpack.c.l.b16 %v136
    %v473 = vunpack.c.h.b16 %v136
    %v474 = vunpack.c.l.b16 %v137
    %v475 = vunpack.c.h.b16 %v137
    %v476 = vunpack.c.l.b16 %v138
    %v477 = vunpack.c.h.b16 %v138
    %v478 = vunpack.c.l.b16 %v139
    %v479 = vunpack.c.h.b16 %v139
    %v480 = vunpack.c.l.b16 %v140
    %v481 = vunpack.c.h.b16 %v140
    %v482 = vunpack.c.l.b16 %v141
    %v483 = vunpack.c.h.b16 %v141
    %v484 = vunpack.c.l.b16 %v142
    %v485 = vunpack.c.h.b16 %v142
    %v486 = vunpack.c.l.b16 %v143
    %v487 = vunpack.c.h.b16 %v143
    %v488 = vpack.c.b16 %v300, %v296
    %v489 = vpack.c.b16 %v301, %v297
    %v490 = vpack.c.b16 %v302, %v298
    %v491 = vpack.c.b16 %v303, %v299
    %v492 = vpack.c.b16 %v308, %v304
    %v493 = vpack.c.b16 %v309, %v305
    %v494 = vpack.c.b16 %v310, %v306
    %v495 = vpack.c.b16 %v311, %v307
    %v496 = vpack.c.b16 %v316, %v312
    %v497 = vpack.c.b16 %v317, %v313
    %v498 = vpack.c.b16 %v318, %v314
    %v499 = vpack.c.b16 %v319, %v315
    %v500 = vpack.c.b16 %v324, %v320
    %v501 = vpack.c.b16 %v325, %v321
    %v502 = vpack.c.b16 %v326, %v322
    %v503 = vpack.c.b16 %v327, %v323
    %v504 = vpack.c.b16 %v332, %v328
    %v505 = vpack.c.b16 %v333, %v329
    %v506 = vpack.c.b16 %v334, %v330
    %v507 = vpack.c.b16 %v335, %v331
    %v508 = vpack.c.b16 %v340, %v336
    %v509 = vpack.c.b16 %v341, %v337
    %v510 = vpack.c.b16 %v342, %v338
    %v511 = vpack.c.b16 %v343, %v339
    %v512 = vpack.c.b16 %v348, %v344
    %v513 = vpack.c.b16 %v349, %v345
    %v514 = vpack.c.b16 %v350, %v346
    %v515 = vpack.c.b16 %v351, %v347
    %v516 = vpack.c.b16 %v356, %v352
    %v517 = vpack.c.b16 %v357, %v353
    %v518 = vpack.c.b16 %v358, %v354
    %v519 = vpack.c.b16 %v359, %v355
    %v520 = vpack.c.b16 %v364, %v360
    %v521 = vpack.c.b16 %v365, %v361
    %v522 = vpack.c.b16 %v366, %v362
    %v523 = vpack.c.b16 %v367, %v363
    %v524 = vpack.c.b16 %v372, %v368
    %v525 = vpack.c.b16 %v373, %v369
    %v526 = vpack.c.b16 %v374, %v370
    %v527 = vpack.c.b16 %v375, %v371
    %v528 = vpack.c.b16 %v380, %v376
    %v529 = vpack.c.b16 %v381, %v377
    %v530 = vpack.c.b16 %v382, %v378
    %v531 = vpack.c.b16 %v383, %v379
    %v532 = vpack.c.b16 %v388, %v384
    %v533 = vpack.c.b16 %v389, %v385
    %v534 = vpack.c.b16 %v390, %v386
    %v535 = vpack.c.b16 %v391, %v387
    %v536 = vpack.c.b16 %v396, %v392
    %v537 = vpack.c.b16 %v397, %v393
    %v538 = vpack.c.b16 %v398, %v394
    %v539 = vpack.c.b16 %v399, %v395
    %v540 = vpack.c.b16 %v404, %v400
    %v541 = vpack.c.b16 %v405, %v401
    %v542 = vpack.c.b16 %v406, %v402
    %v543 = vpack.c.b16 %v407, %v403
    %v544 = vpack.c.b16 %v412, %v408
    %v545 = vpack.c.b16 %v413, %v409
    %v546 = vpack.c.b16 %v414, %v410
    %v547 = vpack.c.b16 %v415, %v411
    %v548 = vpack.c.b16 %v420, %v416
    %v549 = vpack.c.b16 %v421, %v417
    %v550 = vpack.c.b16 %v422, %v418
    %v551 = vpack.c.b16 %v423, %v419
    %v552 = vpack.c.b16 %v428, %v424
    %v553 = vpack.c.b16 %v429, %v425
    %v554 = vpack.c.b16 %v430, %v426
    %v555 = vpack.c.b16 %v431, %v427
    %v556 = vpack.c.b16 %v436, %v432
    %v557 = vpack.c.b16 %v437, %v433
    %v558 = vpack.c.b16 %v438, %v434
    %v559 = vpack.c.b16 %v439, %v435
    %v560 = vpack.c.b16 %v444, %v440
    %v561 = vpack.c.b16 %v445, %v441
    %v562 = vpack.c.b16 %v446, %v442
    %v563 = vpack.c.b16 %v447, %v443
    %v564 = vpack.c.b16 %v452, %v448
    %v565 = vpack.c.b16 %v453, %v449
    %v566 = vpack.c.b16 %v454, %v450
    %v567 = vpack.c.b16 %v455, %v451
    %v568 = vpack.c.b16 %v460, %v456
    %v569 = vpack.c.b16 %v461, %v457
    %v570 = vpack.c.b16 %v462, %v458
    %v571 = vpack.c.b16 %v463, %v459
    %v572 = vpack.c.b16 %v468, %v464
    %v573 = vpack.c.b16 %v469, %v465
    %v574 = vpack.c.b16 %v470, %v466
    %v575 = vpack.c.b16 %v471, %v467
    %v576 = vpack.c.b16 %v476, %v472
    %v577 = vpack.c.b16 %v477, %v473
    %v578 = vpack.c.b16 %v478, %v474
    %v579 = vpack.c.b16 %v479, %v475
    %v580 = vpack.c.b16 %v484, %v480
    %v581 = vpack.c.b16 %v485, %v481
    %v582 = vpack.c.b16 %v486, %v482
    %v583 = vpack.c.b16 %v487, %v483
    %680 = vmatpush.bf16.msra.mxu0 %v516
    %681 = vmatpush.bf16.msra.mxu0 %v512
    %682 = vmatpush.bf16.msra.mxu0 %v508
    %683 = vmatpush.bf16.msra.mxu0 %v504
    %684 = vmatpush.bf16.msra.mxu0 %v500
    %685 = vmatpush.bf16.msra.mxu0 %v496
    %686 = vmatpush.bf16.msra.mxu0 %v492
    %687 = vmatpush.bf16.msra.mxu0 %v488
    %688 = vmatmul.bf16.gmra.mxu0 %v188
    %v689 = vpop.f32.mrf.mxu0
    %v690 = vadd.f32 %v151, %v689
    %v691 = vpop.f32.mrf.mxu0
    %v692 = vadd.f32 %v156, %v691
    %693 = vmatmul.bf16.gmra.mxu0 %v191
    %v694 = vpop.f32.mrf.mxu0
    %v695 = vadd.f32 %v161, %v694
    %v696 = vpop.f32.mrf.mxu0
    %v697 = vadd.f32 %v166, %v696
    %698 = vdwg.mxu0
    %699 = vmatpush.bf16.msra.mxu0 %v548
    %700 = vmatpush.bf16.msra.mxu0 %v544
    %701 = vmatpush.bf16.msra.mxu0 %v540
    %702 = vmatpush.bf16.msra.mxu0 %v536
    %703 = vmatpush.bf16.msra.mxu0 %v532
    %704 = vmatpush.bf16.msra.mxu0 %v528
    %705 = vmatpush.bf16.msra.mxu0 %v524
    %706 = vmatpush.bf16.msra.mxu0 %v520
    %707 = vmatmul.bf16.gmra.mxu0 %v189
    %v708 = vpop.f32.mrf.mxu0
    %v709 = vadd.f32 %v690, %v708
    %v710 = vpop.f32.mrf.mxu0
    %v711 = vadd.f32 %v692, %v710
    %712 = vmatmul.bf16.gmra.mxu0 %v192
    %v713 = vpop.f32.mrf.mxu0
    %v714 = vadd.f32 %v695, %v713
    %v715 = vpop.f32.mrf.mxu0
    %v716 = vadd.f32 %v697, %v715
    %717 = vdwg.mxu0
    %718 = vmatpush.bf16.msra.mxu0 %v580
    %719 = vmatpush.bf16.msra.mxu0 %v576
    %720 = vmatpush.bf16.msra.mxu0 %v572
    %721 = vmatpush.bf16.msra.mxu0 %v568
    %722 = vmatpush.bf16.msra.mxu0 %v564
    %723 = vmatpush.bf16.msra.mxu0 %v560
    %724 = vmatpush.bf16.msra.mxu0 %v556
    %725 = vmatpush.bf16.msra.mxu0 %v552
    %726 = vmatmul.bf16.gmra.mxu0 %v190
    %v727 = vpop.f32.mrf.mxu0
    %v728 = vadd.f32 %v709, %v727
    %v729 = vpop.f32.mrf.mxu0
    %v730 = vadd.f32 %v711, %v729
    %731 = vmatmul.bf16.gmra.mxu0 %v193
    %v732 = vpop.f32.mrf.mxu0
    %v733 = vadd.f32 %v714, %v732
    %v734 = vpop.f32.mrf.mxu0
    %v735 = vadd.f32 %v716, %v734
    %736 = vdwg.mxu0
    %737 = vmatpush.bf16.msra.mxu0 %v517
    %738 = vmatpush.bf16.msra.mxu0 %v513
    %739 = vmatpush.bf16.msra.mxu0 %v509
    %740 = vmatpush.bf16.msra.mxu0 %v505
    %741 = vmatpush.bf16.msra.mxu0 %v501
    %742 = vmatpush.bf16.msra.mxu0 %v497
    %743 = vmatpush.bf16.msra.mxu0 %v493
    %744 = vmatpush.bf16.msra.mxu0 %v489
    %745 = vmatmul.bf16.gmra.mxu0 %v188
    %v746 = vpop.f32.mrf.mxu0
    %v747 = vadd.f32 %v151, %v746
    %v748 = vpop.f32.mrf.mxu0
    %v749 = vadd.f32 %v156, %v748
    %750 = vmatmul.bf16.gmra.mxu0 %v191
    %v751 = vpop.f32.mrf.mxu0
    %v752 = vadd.f32 %v161, %v751
    %v753 = vpop.f32.mrf.mxu0
    %v754 = vadd.f32 %v166, %v753
    %755 = vdwg.mxu0
    %756 = vmatpush.bf16.msra.mxu0 %v549
    %757 = vmatpush.bf16.msra.mxu0 %v545
    %758 = vmatpush.bf16.msra.mxu0 %v541
    %759 = vmatpush.bf16.msra.mxu0 %v537
    %760 = vmatpush.bf16.msra.mxu0 %v533
    %761 = vmatpush.bf16.msra.mxu0 %v529
    %762 = vmatpush.bf16.msra.mxu0 %v525
    %763 = vmatpush.bf16.msra.mxu0 %v521
    %764 = vmatmul.bf16.gmra.mxu0 %v189
    %v765 = vpop.f32.mrf.mxu0
    %v766 = vadd.f32 %v747, %v765
    %v767 = vpop.f32.mrf.mxu0
    %v768 = vadd.f32 %v749, %v767
    %769 = vmatmul.bf16.gmra.mxu0 %v192
    %v770 = vpop.f32.mrf.mxu0
    %v771 = vadd.f32 %v752, %v770
    %v772 = vpop.f32.mrf.mxu0
    %v773 = vadd.f32 %v754, %v772
    %774 = vdwg.mxu0
    %775 = vmatpush.bf16.msra.mxu0 %v581
    %776 = vmatpush.bf16.msra.mxu0 %v577
    %777 = vmatpush.bf16.msra.mxu0 %v573
    %778 = vmatpush.bf16.msra.mxu0 %v569
    %779 = vmatpush.bf16.msra.mxu0 %v565
    %780 = vmatpush.bf16.msra.mxu0 %v561
    %781 = vmatpush.bf16.msra.mxu0 %v557
    %782 = vmatpush.bf16.msra.mxu0 %v553
    %783 = vmatmul.bf16.gmra.mxu0 %v190
    %v784 = vpop.f32.mrf.mxu0
    %v785 = vadd.f32 %v766, %v784
    %v786 = vpop.f32.mrf.mxu0
    %v787 = vadd.f32 %v768, %v786
    %788 = vmatmul.bf16.gmra.mxu0 %v193
    %v789 = vpop.f32.mrf.mxu0
    %v790 = vadd.f32 %v771, %v789
    %v791 = vpop.f32.mrf.mxu0
    %v792 = vadd.f32 %v773, %v791
    %793 = vdwg.mxu0
    %794 = vmatpush.bf16.msra.mxu0 %v518
    %795 = vmatpush.bf16.msra.mxu0 %v514
    %796 = vmatpush.bf16.msra.mxu0 %v510
    %797 = vmatpush.bf16.msra.mxu0 %v506
    %798 = vmatpush.bf16.msra.mxu0 %v502
    %799 = vmatpush.bf16.msra.mxu0 %v498
    %800 = vmatpush.bf16.msra.mxu0 %v494
    %801 = vmatpush.bf16.msra.mxu0 %v490
    %802 = vmatmul.bf16.gmra.mxu0 %v188
    %v803 = vpop.f32.mrf.mxu0
    %v804 = vadd.f32 %v151, %v803
    %v805 = vpop.f32.mrf.mxu0
    %v806 = vadd.f32 %v156, %v805
    %807 = vmatmul.bf16.gmra.mxu0 %v191
    %v808 = vpop.f32.mrf.mxu0
    %v809 = vadd.f32 %v161, %v808
    %v810 = vpop.f32.mrf.mxu0
    %v811 = vadd.f32 %v166, %v810
    %812 = vdwg.mxu0
    %813 = vmatpush.bf16.msra.mxu0 %v550
    %814 = vmatpush.bf16.msra.mxu0 %v546
    %815 = vmatpush.bf16.msra.mxu0 %v542
    %816 = vmatpush.bf16.msra.mxu0 %v538
    %817 = vmatpush.bf16.msra.mxu0 %v534
    %818 = vmatpush.bf16.msra.mxu0 %v530
    %819 = vmatpush.bf16.msra.mxu0 %v526
    %820 = vmatpush.bf16.msra.mxu0 %v522
    %821 = vmatmul.bf16.gmra.mxu0 %v189
    %v822 = vpop.f32.mrf.mxu0
    %v823 = vadd.f32 %v804, %v822
    %v824 = vpop.f32.mrf.mxu0
    %v825 = vadd.f32 %v806, %v824
    %826 = vmatmul.bf16.gmra.mxu0 %v192
    %v827 = vpop.f32.mrf.mxu0
    %v828 = vadd.f32 %v809, %v827
    %v829 = vpop.f32.mrf.mxu0
    %v830 = vadd.f32 %v811, %v829
    %831 = vdwg.mxu0
    %832 = vmatpush.bf16.msra.mxu0 %v582
    %833 = vmatpush.bf16.msra.mxu0 %v578
    %834 = vmatpush.bf16.msra.mxu0 %v574
    %835 = vmatpush.bf16.msra.mxu0 %v570
    %836 = vmatpush.bf16.msra.mxu0 %v566
    %837 = vmatpush.bf16.msra.mxu0 %v562
    %838 = vmatpush.bf16.msra.mxu0 %v558
    %839 = vmatpush.bf16.msra.mxu0 %v554
    %840 = vmatmul.bf16.gmra.mxu0 %v190
    %v841 = vpop.f32.mrf.mxu0
    %v842 = vadd.f32 %v823, %v841
    %v843 = vpop.f32.mrf.mxu0
    %v844 = vadd.f32 %v825, %v843
    %845 = vmatmul.bf16.gmra.mxu0 %v193
    %v846 = vpop.f32.mrf.mxu0
    %v847 = vadd.f32 %v828, %v846
    %v848 = vpop.f32.mrf.mxu0
    %v849 = vadd.f32 %v830, %v848
    %850 = vdwg.mxu0
    %851 = vmatpush.bf16.msra.mxu0 %v519
    %852 = vmatpush.bf16.msra.mxu0 %v515
    %853 = vmatpush.bf16.msra.mxu0 %v511
    %854 = vmatpush.bf16.msra.mxu0 %v507
    %855 = vmatpush.bf16.msra.mxu0 %v503
    %856 = vmatpush.bf16.msra.mxu0 %v499
    %857 = vmatpush.bf16.msra.mxu0 %v495
    %858 = vmatpush.bf16.msra.mxu0 %v491
    %859 = vmatmul.bf16.gmra.mxu0 %v188
    %v860 = vpop.f32.mrf.mxu0
    %v861 = vadd.f32 %v151, %v860
    %v862 = vpop.f32.mrf.mxu0
    %v863 = vadd.f32 %v156, %v862
    %864 = vmatmul.bf16.gmra.mxu0 %v191
    %v865 = vpop.f32.mrf.mxu0
    %v866 = vadd.f32 %v161, %v865
    %v867 = vpop.f32.mrf.mxu0
    %v868 = vadd.f32 %v166, %v867
    %869 = vdwg.mxu0
    %870 = vmatpush.bf16.msra.mxu0 %v551
    %871 = vmatpush.bf16.msra.mxu0 %v547
    %872 = vmatpush.bf16.msra.mxu0 %v543
    %873 = vmatpush.bf16.msra.mxu0 %v539
    %874 = vmatpush.bf16.msra.mxu0 %v535
    %875 = vmatpush.bf16.msra.mxu0 %v531
    %876 = vmatpush.bf16.msra.mxu0 %v527
    %877 = vmatpush.bf16.msra.mxu0 %v523
    %878 = vmatmul.bf16.gmra.mxu0 %v189
    %v879 = vpop.f32.mrf.mxu0
    %v880 = vadd.f32 %v861, %v879
    %v881 = vpop.f32.mrf.mxu0
    %v882 = vadd.f32 %v863, %v881
    %883 = vmatmul.bf16.gmra.mxu0 %v192
    %v884 = vpop.f32.mrf.mxu0
    %v885 = vadd.f32 %v866, %v884
    %v886 = vpop.f32.mrf.mxu0
    %v887 = vadd.f32 %v868, %v886
    %888 = vdwg.mxu0
    %889 = vmatpush.bf16.msra.mxu0 %v583
    %890 = vmatpush.bf16.msra.mxu0 %v579
    %891 = vmatpush.bf16.msra.mxu0 %v575
    %892 = vmatpush.bf16.msra.mxu0 %v571
    %893 = vmatpush.bf16.msra.mxu0 %v567
    %894 = vmatpush.bf16.msra.mxu0 %v563
    %895 = vmatpush.bf16.msra.mxu0 %v559
    %896 = vmatpush.bf16.msra.mxu0 %v555
    %897 = vmatmul.bf16.gmra.mxu0 %v190
    %v898 = vpop.f32.mrf.mxu0
    %v899 = vadd.f32 %v880, %v898
    %v900 = vpop.f32.mrf.mxu0
    %v901 = vadd.f32 %v882, %v900
    %902 = vmatmul.bf16.gmra.mxu0 %v193
    %v903 = vpop.f32.mrf.mxu0
    %v904 = vadd.f32 %v885, %v903
    %v905 = vpop.f32.mrf.mxu0
    %v906 = vadd.f32 %v887, %v905
    %907 = vdwg.mxu0
    %vm908 = vcmp.gt.f32.partialorder %v728, 0.0
    %vm909 = vcmp.gt.f32.partialorder %v785, 0.0
    %vm910 = vcmp.gt.f32.partialorder %v842, 0.0
    %vm911 = vcmp.gt.f32.partialorder %v899, 0.0
    %vm912 = vcmp.gt.f32.partialorder %v730, 0.0
    %vm913 = vcmp.gt.f32.partialorder %v787, 0.0
    %vm914 = vcmp.gt.f32.partialorder %v844, 0.0
    %vm915 = vcmp.gt.f32.partialorder %v901, 0.0
    %vm916 = vcmp.gt.f32.partialorder %v733, 0.0
    %vm917 = vcmp.gt.f32.partialorder %v790, 0.0
    %vm918 = vcmp.gt.f32.partialorder %v847, 0.0
    %vm919 = vcmp.gt.f32.partialorder %v904, 0.0
    %vm920 = vcmp.gt.f32.partialorder %v735, 0.0
    %vm921 = vcmp.gt.f32.partialorder %v792, 0.0
    %vm922 = vcmp.gt.f32.partialorder %v849, 0.0
    %vm923 = vcmp.gt.f32.partialorder %v906, 0.0
    %v924 = vmin.f32 %v728, 0.0
    %v925 = vmin.f32 %v785, 0.0
    %v926 = vmin.f32 %v842, 0.0
    %v927 = vmin.f32 %v899, 0.0
    %v928 = vmin.f32 %v730, 0.0
    %v929 = vmin.f32 %v787, 0.0
    %v930 = vmin.f32 %v844, 0.0
    %v931 = vmin.f32 %v901, 0.0
    %v932 = vmin.f32 %v733, 0.0
    %v933 = vmin.f32 %v790, 0.0
    %v934 = vmin.f32 %v847, 0.0
    %v935 = vmin.f32 %v904, 0.0
    %v936 = vmin.f32 %v735, 0.0
    %v937 = vmin.f32 %v792, 0.0
    %v938 = vmin.f32 %v849, 0.0
    %v939 = vmin.f32 %v906, 0.0
    %v940 = vmul.f32 %v924, 1.442695
    %v941 = vpow.pop %v940
    %v942 = vmul.f32 %v925, 1.442695
    %v943 = vpow.pop %v942
    %v944 = vmul.f32 %v926, 1.442695
    %v945 = vpow.pop %v944
    %v946 = vmul.f32 %v927, 1.442695
    %v947 = vpow.pop %v946
    %v948 = vmul.f32 %v928, 1.442695
    %v949 = vpow.pop %v948
    %v950 = vmul.f32 %v929, 1.442695
    %v951 = vpow.pop %v950
    %v952 = vmul.f32 %v930, 1.442695
    %v953 = vpow.pop %v952
    %v954 = vmul.f32 %v931, 1.442695
    %v955 = vpow.pop %v954
    %v956 = vmul.f32 %v932, 1.442695
    %v957 = vpow.pop %v956
    %v958 = vmul.f32 %v933, 1.442695
    %v959 = vpow.pop %v958
    %v960 = vmul.f32 %v934, 1.442695
    %v961 = vpow.pop %v960
    %v962 = vmul.f32 %v935, 1.442695
    %v963 = vpow.pop %v962
    %v964 = vmul.f32 %v936, 1.442695
    %v965 = vpow.pop %v964
    %v966 = vmul.f32 %v937, 1.442695
    %v967 = vpow.pop %v966
    %v968 = vmul.f32 %v938, 1.442695
    %v969 = vpow.pop %v968
    %v970 = vmul.f32 %v939, 1.442695
    %v971 = vpow.pop %v970
    %v972 = vsub.f32 %v941, 1.0
    %v973 = vsub.f32 %v943, 1.0
    %v974 = vsub.f32 %v945, 1.0
    %v975 = vsub.f32 %v947, 1.0
    %v976 = vsub.f32 %v949, 1.0
    %v977 = vsub.f32 %v951, 1.0
    %v978 = vsub.f32 %v953, 1.0
    %v979 = vsub.f32 %v955, 1.0
    %v980 = vsub.f32 %v957, 1.0
    %v981 = vsub.f32 %v959, 1.0
    %v982 = vsub.f32 %v961, 1.0
    %v983 = vsub.f32 %v963, 1.0
    %v984 = vsub.f32 %v965, 1.0
    %v985 = vsub.f32 %v967, 1.0
    %v986 = vsub.f32 %v969, 1.0
    %v987 = vsub.f32 %v971, 1.0
    %v988 = vsel %vm908, %v728, %v972
    %v989 = vsel %vm909, %v785, %v973
    %v990 = vsel %vm910, %v842, %v974
    %v991 = vsel %vm911, %v899, %v975
    %v992 = vsel %vm912, %v730, %v976
    %v993 = vsel %vm913, %v787, %v977
    %v994 = vsel %vm914, %v844, %v978
    %v995 = vsel %vm915, %v901, %v979
    %v996 = vsel %vm916, %v733, %v980
    %v997 = vsel %vm917, %v790, %v981
    %v998 = vsel %vm918, %v847, %v982
    %v999 = vsel %vm919, %v904, %v983
    %v1000 = vsel %vm920, %v735, %v984
    %v1001 = vsel %vm921, %v792, %v985
    %v1002 = vsel %vm922, %v849, %v986
    %v1003 = vsel %vm923, %v906, %v987
    %v1004 = vpack.c.bf16 %v992, %v988
    %v1005 = vpack.c.bf16 %v993, %v989
    %v1006 = vpack.c.bf16 %v994, %v990
    %v1007 = vpack.c.bf16 %v995, %v991
    %v1008 = vpack.c.bf16 %v1000, %v996
    %v1009 = vpack.c.bf16 %v1001, %v997
    %v1010 = vpack.c.bf16 %v1002, %v998
    %v1011 = vpack.c.bf16 %v1003, %v999
    %v1012 = vld [vmem:[%s3] sm:$0xf]
    %v1013 = vld [vmem:[%s3 + $0x4] sm:$0xf]
    %v1014 = vld [vmem:[%s3 + $0x8] sm:$0xf]
    %v1015 = vld [vmem:[%s3 + $0xc] sm:$0xf]
    %v1016 = vld [vmem:[%s3 + $0x10] sm:$0xf]
    %v1017 = vld [vmem:[%s3 + $0x14] sm:$0xf]
    %v1018 = vld [vmem:[%s3 + $0x18] sm:$0xf]
    %v1019 = vld [vmem:[%s3 + $0x1c] sm:$0xf]
    %v1020 = vld [vmem:[%s3 + $0x20] sm:$0xf]
    %v1021 = vld [vmem:[%s3 + $0x24] sm:$0xf]
    %v1022 = vld [vmem:[%s3 + $0x28] sm:$0xf]
    %v1023 = vld [vmem:[%s3 + $0x2c] sm:$0xf]
    %v1024 = vld [vmem:[%s3 + $0x30] sm:$0xf]
    %v1025 = vld [vmem:[%s3 + $0x34] sm:$0xf]
    %v1026 = vld [vmem:[%s3 + $0x38] sm:$0xf]
    %v1027 = vld [vmem:[%s3 + $0x3c] sm:$0xf]
    %v1028 = vld [vmem:[%s3 + $0x40] sm:$0xf]
    %v1029 = vld [vmem:[%s3 + $0x44] sm:$0xf]
    %v1030 = vld [vmem:[%s3 + $0x48] sm:$0xf]
    %v1031 = vld [vmem:[%s3 + $0x4c] sm:$0xf]
    %v1032 = vld [vmem:[%s3 + $0x50] sm:$0xf]
    %v1033 = vld [vmem:[%s3 + $0x54] sm:$0xf]
    %v1034 = vld [vmem:[%s3 + $0x58] sm:$0xf]
    %v1035 = vld [vmem:[%s3 + $0x5c] sm:$0xf]
    %v1036 = vld [vmem:[%s3 + $0x60] sm:$0xf]
    %v1037 = vld [vmem:[%s3 + $0x64] sm:$0xf]
    %v1038 = vld [vmem:[%s3 + $0x68] sm:$0xf]
    %v1039 = vld [vmem:[%s3 + $0x6c] sm:$0xf]
    %v1040 = vld [vmem:[%s3 + $0x70] sm:$0xf]
    %v1041 = vld [vmem:[%s3 + $0x74] sm:$0xf]
    %v1042 = vld [vmem:[%s3 + $0x78] sm:$0xf]
    %v1043 = vld [vmem:[%s3 + $0x7c] sm:$0xf]
    %v1044 = vld [vmem:[%s3 + $0x80] sm:$0xf]
    %v1045 = vld [vmem:[%s3 + $0x84] sm:$0xf]
    %v1046 = vld [vmem:[%s3 + $0x88] sm:$0xf]
    %v1047 = vld [vmem:[%s3 + $0x8c] sm:$0xf]
    %v1048 = vld [vmem:[%s3 + $0x90] sm:$0xf]
    %v1049 = vld [vmem:[%s3 + $0x94] sm:$0xf]
    %v1050 = vld [vmem:[%s3 + $0x98] sm:$0xf]
    %v1051 = vld [vmem:[%s3 + $0x9c] sm:$0xf]
    %v1052 = vld [vmem:[%s3 + $0xa0] sm:$0xf]
    %v1053 = vld [vmem:[%s3 + $0xa4] sm:$0xf]
    %v1054 = vld [vmem:[%s3 + $0xa8] sm:$0xf]
    %v1055 = vld [vmem:[%s3 + $0xac] sm:$0xf]
    %v1056 = vld [vmem:[%s3 + $0xb0] sm:$0xf]
    %v1057 = vld [vmem:[%s3 + $0xb4] sm:$0xf]
    %v1058 = vld [vmem:[%s3 + $0xb8] sm:$0xf]
    %v1059 = vld [vmem:[%s3 + $0xbc] sm:$0xf]
    %v1060 = vld [vmem:[%s3 + $0xc0] sm:$0x1]
    %v1110 = vunpack.c.l.b16 %v1012
    %v1111 = vunpack.c.l.b16 %v1013
    %v1112 = vunpack.c.l.b16 %v1014
    %v1113 = vunpack.c.l.b16 %v1015
    %v1114 = vunpack.c.l.b16 %v1016
    %v1115 = vunpack.c.l.b16 %v1017
    %v1116 = vunpack.c.l.b16 %v1018
    %v1117 = vunpack.c.l.b16 %v1019
    %v1118 = vunpack.c.l.b16 %v1020
    %v1119 = vunpack.c.l.b16 %v1021
    %v1120 = vunpack.c.l.b16 %v1022
    %v1121 = vunpack.c.l.b16 %v1023
    %v1122 = vunpack.c.l.b16 %v1024
    %v1123 = vunpack.c.l.b16 %v1025
    %v1124 = vunpack.c.l.b16 %v1026
    %v1125 = vunpack.c.l.b16 %v1027
    %v1126 = vunpack.c.l.b16 %v1028
    %v1127 = vunpack.c.l.b16 %v1029
    %v1128 = vunpack.c.l.b16 %v1030
    %v1129 = vunpack.c.l.b16 %v1031
    %v1130 = vunpack.c.l.b16 %v1032
    %v1131 = vunpack.c.l.b16 %v1033
    %v1132 = vunpack.c.l.b16 %v1034
    %v1133 = vunpack.c.l.b16 %v1035
    %v1134 = vunpack.c.l.b16 %v1036
    %v1135 = vunpack.c.l.b16 %v1037
    %v1136 = vunpack.c.l.b16 %v1038
    %v1137 = vunpack.c.l.b16 %v1039
    %v1138 = vunpack.c.l.b16 %v1040
    %v1139 = vunpack.c.l.b16 %v1041
    %v1140 = vunpack.c.l.b16 %v1042
    %v1141 = vunpack.c.l.b16 %v1043
    %v1142 = vunpack.c.l.b16 %v1044
    %v1143 = vunpack.c.l.b16 %v1045
    %v1144 = vunpack.c.l.b16 %v1046
    %v1145 = vunpack.c.l.b16 %v1047
    %v1146 = vunpack.c.l.b16 %v1048
    %v1147 = vunpack.c.l.b16 %v1049
    %v1148 = vunpack.c.l.b16 %v1050
    %v1149 = vunpack.c.l.b16 %v1051
    %v1150 = vunpack.c.l.b16 %v1052
    %v1151 = vunpack.c.l.b16 %v1053
    %v1152 = vunpack.c.l.b16 %v1054
    %v1153 = vunpack.c.l.b16 %v1055
    %v1154 = vunpack.c.l.b16 %v1056
    %v1155 = vunpack.c.l.b16 %v1057
    %v1156 = vunpack.c.l.b16 %v1058
    %v1157 = vunpack.c.l.b16 %v1059
    %v1158 = vunpack.c.l.b16 %v1060
    %v1159 = vpack.c.b16 %v1111, %v1110
    %v1160 = vpack.c.b16 %v1113, %v1112
    %v1161 = vpack.c.b16 %v1115, %v1114
    %v1162 = vpack.c.b16 %v1117, %v1116
    %v1163 = vpack.c.b16 %v1119, %v1118
    %v1164 = vpack.c.b16 %v1121, %v1120
    %v1165 = vpack.c.b16 %v1123, %v1122
    %v1166 = vpack.c.b16 %v1125, %v1124
    %v1167 = vpack.c.b16 %v1127, %v1126
    %v1168 = vpack.c.b16 %v1129, %v1128
    %v1169 = vpack.c.b16 %v1131, %v1130
    %v1170 = vpack.c.b16 %v1133, %v1132
    %v1171 = vpack.c.b16 %v1135, %v1134
    %v1172 = vpack.c.b16 %v1137, %v1136
    %v1173 = vpack.c.b16 %v1139, %v1138
    %v1174 = vpack.c.b16 %v1141, %v1140
    %v1175 = vpack.c.b16 %v1143, %v1142
    %v1176 = vpack.c.b16 %v1145, %v1144
    %v1177 = vpack.c.b16 %v1147, %v1146
    %v1178 = vpack.c.b16 %v1149, %v1148
    %v1179 = vpack.c.b16 %v1151, %v1150
    %v1180 = vpack.c.b16 %v1153, %v1152
    %v1181 = vpack.c.b16 %v1155, %v1154
    %v1182 = vpack.c.b16 %v1157, %v1156
    %v1183 = vpack.c.b16 %v1158, %v1158
    %vm1208 = vcmask 7168
    %v1210 = vsel %vm1208, %v1007, 0
    %v1213 = vsel %vm1208, %v1011, 0
    %vm1215 = vcmask 1040384
    %v1216 = vsel 0, 4294967295, 65535
    %v1217 = vsel %vm1215, %v1216, 0
    %v1219 = vand.u32 %v1183, %v1217
    %1221 = vmatpush.bf16.msra.mxu0 %v1166
    %1222 = vmatpush.bf16.msra.mxu0 %v1165
    %1223 = vmatpush.bf16.msra.mxu0 %v1164
    %1224 = vmatpush.bf16.msra.mxu0 %v1163
    %1225 = vmatpush.bf16.msra.mxu0 %v1162
    %1226 = vmatpush.bf16.msra.mxu0 %v1161
    %1227 = vmatpush.bf16.msra.mxu0 %v1160
    %1228 = vmatpush.bf16.msra.mxu0 %v1159
    %1229 = vmatmul.bf16.gmra.mxu0 %v1004
    %v1230 = vpop.f32.mrf.mxu0
    %v1231 = vadd.f32 0.0, %v1230
    %v1232 = vpop.f32.mrf.mxu0
    %v1233 = vadd.f32 0.0, %v1232
    %1234 = vmatmul.bf16.gmra.mxu0 %v1008
    %v1235 = vpop.f32.mrf.mxu0
    %v1236 = vadd.f32 0.0, %v1235
    %v1237 = vpop.f32.mrf.mxu0
    %v1238 = vadd.f32 0.0, %v1237
    %1239 = vdwg.mxu0
    %1240 = vmatpush.bf16.msra.mxu0 %v1174
    %1241 = vmatpush.bf16.msra.mxu0 %v1173
    %1242 = vmatpush.bf16.msra.mxu0 %v1172
    %1243 = vmatpush.bf16.msra.mxu0 %v1171
    %1244 = vmatpush.bf16.msra.mxu0 %v1170
    %1245 = vmatpush.bf16.msra.mxu0 %v1169
    %1246 = vmatpush.bf16.msra.mxu0 %v1168
    %1247 = vmatpush.bf16.msra.mxu0 %v1167
    %1248 = vmatmul.bf16.gmra.mxu0 %v1005
    %v1249 = vpop.f32.mrf.mxu0
    %v1250 = vadd.f32 %v1231, %v1249
    %v1251 = vpop.f32.mrf.mxu0
    %v1252 = vadd.f32 %v1233, %v1251
    %1253 = vmatmul.bf16.gmra.mxu0 %v1009
    %v1254 = vpop.f32.mrf.mxu0
    %v1255 = vadd.f32 %v1236, %v1254
    %v1256 = vpop.f32.mrf.mxu0
    %v1257 = vadd.f32 %v1238, %v1256
    %1258 = vdwg.mxu0
    %1259 = vmatpush.bf16.msra.mxu0 %v1182
    %1260 = vmatpush.bf16.msra.mxu0 %v1181
    %1261 = vmatpush.bf16.msra.mxu0 %v1180
    %1262 = vmatpush.bf16.msra.mxu0 %v1179
    %1263 = vmatpush.bf16.msra.mxu0 %v1178
    %1264 = vmatpush.bf16.msra.mxu0 %v1177
    %1265 = vmatpush.bf16.msra.mxu0 %v1176
    %1266 = vmatpush.bf16.msra.mxu0 %v1175
    %1267 = vmatmul.bf16.gmra.mxu0 %v1006
    %v1268 = vpop.f32.mrf.mxu0
    %v1269 = vadd.f32 %v1250, %v1268
    %v1270 = vpop.f32.mrf.mxu0
    %v1271 = vadd.f32 %v1252, %v1270
    %1272 = vmatmul.bf16.gmra.mxu0 %v1010
    %v1273 = vpop.f32.mrf.mxu0
    %v1274 = vadd.f32 %v1255, %v1273
    %v1275 = vpop.f32.mrf.mxu0
    %v1276 = vadd.f32 %v1257, %v1275
    %1277 = vdwg.mxu0
    %1278 = vmatpush.bf16.msra.mxu0 0
    %1279 = vmatpush.bf16.msra.mxu0 0
    %1280 = vmatpush.bf16.msra.mxu0 0
    %1281 = vmatpush.bf16.msra.mxu0 0
    %1282 = vmatpush.bf16.msra.mxu0 0
    %1283 = vmatpush.bf16.msra.mxu0 0
    %1284 = vmatpush.bf16.msra.mxu0 0
    %1285 = vmatpush.bf16.msra.mxu0 %v1219
    %1286 = vmatmul.bf16.gmra.mxu0 %v1210
    %v1287 = vpop.f32.mrf.mxu0
    %v1288 = vadd.f32 %v1269, %v1287
    %v1289 = vpop.f32.mrf.mxu0
    %v1290 = vadd.f32 %v1271, %v1289
    %1291 = vmatmul.bf16.gmra.mxu0 %v1213
    %v1292 = vpop.f32.mrf.mxu0
    %v1293 = vadd.f32 %v1274, %v1292
    %v1294 = vpop.f32.mrf.mxu0
    %v1295 = vadd.f32 %v1276, %v1294
    %1296 = vdwg.mxu0
    %v1297 = vld [vmem:[%s4] sm:$0xff]
    %v1298 = vld [vmem:[%s4 + $0x8] sm:$0xff]
    %v1299 = vld [vmem:[%s4 + $0x10] sm:$0xff]
    %v1300 = vld [vmem:[%s4 + $0x18] sm:$0xff]
    %1302 = vset.pattern.permute.xlu0 0
    %1303 = vperm.xlu0 %1302, %v1297
    %v1304 = vpop.permute.xlu0 %1303
    %1307 = vset.pattern.permute.xlu0 0
    %1308 = vperm.xlu0 %1307, %v1298
    %v1309 = vpop.permute.xlu0 %1308
    %1312 = vset.pattern.permute.xlu0 0
    %1313 = vperm.xlu0 %1312, %v1299
    %v1314 = vpop.permute.xlu0 %1313
    %1317 = vset.pattern.permute.xlu0 0
    %1318 = vperm.xlu0 %1317, %v1300
    %v1319 = vpop.permute.xlu0 %1318
    %v1321 = vmul.f32 %v1304, %v1288
    %v1322 = vmul.f32 %v1309, %v1290
    %v1323 = vmul.f32 %v1314, %v1293
    %v1324 = vmul.f32 %v1319, %v1295
    %1325 = vset.pattern.permute.xlu0 1
    %1326 = vperm.xlu0 %1325, %v1297
    %v1327 = vpop.permute.xlu0 %1326
    %1329 = vset.pattern.permute.xlu0 1
    %1330 = vperm.xlu0 %1329, %v1298
    %v1331 = vpop.permute.xlu0 %1330
    %1333 = vset.pattern.permute.xlu0 1
    %1334 = vperm.xlu0 %1333, %v1299
    %v1335 = vpop.permute.xlu0 %1334
    %1337 = vset.pattern.permute.xlu0 1
    %1338 = vperm.xlu0 %1337, %v1300
    %v1339 = vpop.permute.xlu0 %1338
    %v1341 = vmul.f32 %v1327, %v1288
    %v1342 = vmul.f32 %v1331, %v1290
    %v1343 = vmul.f32 %v1335, %v1293
    %v1344 = vmul.f32 %v1339, %v1295
    %1349 = vrot.lane.b32.xlu0 %v1341, 127
    %v1350 = vpop.permute.xlu0 %1349
    %1351 = vrot.lane.b32.xlu0 %v1342, 127
    %v1352 = vpop.permute.xlu0 %1351
    %1353 = vrot.lane.b32.xlu0 %v1343, 127
    %v1354 = vpop.permute.xlu0 %1353
    %1355 = vrot.lane.b32.xlu0 %v1344, 127
    %v1356 = vpop.permute.xlu0 %1355
    %v1361 = vadd.f32 %v1321, %v1350
    %v1362 = vadd.f32 %v1322, %v1352
    %v1363 = vadd.f32 %v1323, %v1354
    %v1364 = vadd.f32 %v1324, %v1356
    %1365 = vset.pattern.permute.xlu0 2
    %1366 = vperm.xlu0 %1365, %v1297
    %v1367 = vpop.permute.xlu0 %1366
    %1369 = vset.pattern.permute.xlu0 2
    %1370 = vperm.xlu0 %1369, %v1298
    %v1371 = vpop.permute.xlu0 %1370
    %1373 = vset.pattern.permute.xlu0 2
    %1374 = vperm.xlu0 %1373, %v1299
    %v1375 = vpop.permute.xlu0 %1374
    %1377 = vset.pattern.permute.xlu0 2
    %1378 = vperm.xlu0 %1377, %v1300
    %v1379 = vpop.permute.xlu0 %1378
    %v1381 = vmul.f32 %v1367, %v1288
    %v1382 = vmul.f32 %v1371, %v1290
    %v1383 = vmul.f32 %v1375, %v1293
    %v1384 = vmul.f32 %v1379, %v1295
    %1389 = vrot.lane.b32.xlu0 %v1381, 126
    %v1390 = vpop.permute.xlu0 %1389
    %1391 = vrot.lane.b32.xlu0 %v1382, 126
    %v1392 = vpop.permute.xlu0 %1391
    %1393 = vrot.lane.b32.xlu0 %v1383, 126
    %v1394 = vpop.permute.xlu0 %1393
    %1395 = vrot.lane.b32.xlu0 %v1384, 126
    %v1396 = vpop.permute.xlu0 %1395
    %v1401 = vadd.f32 %v1361, %v1390
    %v1402 = vadd.f32 %v1362, %v1392
    %v1403 = vadd.f32 %v1363, %v1394
    %v1404 = vadd.f32 %v1364, %v1396
    %1405 = vset.pattern.permute.xlu0 3
    %1406 = vperm.xlu0 %1405, %v1297
    %v1407 = vpop.permute.xlu0 %1406
    %1409 = vset.pattern.permute.xlu0 3
    %1410 = vperm.xlu0 %1409, %v1298
    %v1411 = vpop.permute.xlu0 %1410
    %1413 = vset.pattern.permute.xlu0 3
    %1414 = vperm.xlu0 %1413, %v1299
    %v1415 = vpop.permute.xlu0 %1414
    %1417 = vset.pattern.permute.xlu0 3
    %1418 = vperm.xlu0 %1417, %v1300
    %v1419 = vpop.permute.xlu0 %1418
    %v1421 = vmul.f32 %v1407, %v1288
    %v1422 = vmul.f32 %v1411, %v1290
    %v1423 = vmul.f32 %v1415, %v1293
    %v1424 = vmul.f32 %v1419, %v1295
    %1429 = vrot.lane.b32.xlu0 %v1421, 125
    %v1430 = vpop.permute.xlu0 %1429
    %1431 = vrot.lane.b32.xlu0 %v1422, 125
    %v1432 = vpop.permute.xlu0 %1431
    %1433 = vrot.lane.b32.xlu0 %v1423, 125
    %v1434 = vpop.permute.xlu0 %1433
    %1435 = vrot.lane.b32.xlu0 %v1424, 125
    %v1436 = vpop.permute.xlu0 %1435
    %v1441 = vadd.f32 %v1401, %v1430
    %v1442 = vadd.f32 %v1402, %v1432
    %v1443 = vadd.f32 %v1403, %v1434
    %v1444 = vadd.f32 %v1404, %v1436
    %1445 = vset.pattern.permute.xlu0 4
    %1446 = vperm.xlu0 %1445, %v1297
    %v1447 = vpop.permute.xlu0 %1446
    %1449 = vset.pattern.permute.xlu0 4
    %1450 = vperm.xlu0 %1449, %v1298
    %v1451 = vpop.permute.xlu0 %1450
    %1453 = vset.pattern.permute.xlu0 4
    %1454 = vperm.xlu0 %1453, %v1299
    %v1455 = vpop.permute.xlu0 %1454
    %1457 = vset.pattern.permute.xlu0 4
    %1458 = vperm.xlu0 %1457, %v1300
    %v1459 = vpop.permute.xlu0 %1458
    %v1461 = vmul.f32 %v1447, %v1288
    %v1462 = vmul.f32 %v1451, %v1290
    %v1463 = vmul.f32 %v1455, %v1293
    %v1464 = vmul.f32 %v1459, %v1295
    %1469 = vrot.lane.b32.xlu0 %v1461, 124
    %v1470 = vpop.permute.xlu0 %1469
    %1471 = vrot.lane.b32.xlu0 %v1462, 124
    %v1472 = vpop.permute.xlu0 %1471
    %1473 = vrot.lane.b32.xlu0 %v1463, 124
    %v1474 = vpop.permute.xlu0 %1473
    %1475 = vrot.lane.b32.xlu0 %v1464, 124
    %v1476 = vpop.permute.xlu0 %1475
    %v1481 = vadd.f32 %v1441, %v1470
    %v1482 = vadd.f32 %v1442, %v1472
    %v1483 = vadd.f32 %v1443, %v1474
    %v1484 = vadd.f32 %v1444, %v1476
    %1485 = vset.pattern.permute.xlu0 5
    %1486 = vperm.xlu0 %1485, %v1297
    %v1487 = vpop.permute.xlu0 %1486
    %1489 = vset.pattern.permute.xlu0 5
    %1490 = vperm.xlu0 %1489, %v1298
    %v1491 = vpop.permute.xlu0 %1490
    %1493 = vset.pattern.permute.xlu0 5
    %1494 = vperm.xlu0 %1493, %v1299
    %v1495 = vpop.permute.xlu0 %1494
    %1497 = vset.pattern.permute.xlu0 5
    %1498 = vperm.xlu0 %1497, %v1300
    %v1499 = vpop.permute.xlu0 %1498
    %v1501 = vmul.f32 %v1487, %v1288
    %v1502 = vmul.f32 %v1491, %v1290
    %v1503 = vmul.f32 %v1495, %v1293
    %v1504 = vmul.f32 %v1499, %v1295
    %1509 = vrot.lane.b32.xlu0 %v1501, 123
    %v1510 = vpop.permute.xlu0 %1509
    %1511 = vrot.lane.b32.xlu0 %v1502, 123
    %v1512 = vpop.permute.xlu0 %1511
    %1513 = vrot.lane.b32.xlu0 %v1503, 123
    %v1514 = vpop.permute.xlu0 %1513
    %1515 = vrot.lane.b32.xlu0 %v1504, 123
    %v1516 = vpop.permute.xlu0 %1515
    %v1521 = vadd.f32 %v1481, %v1510
    %v1522 = vadd.f32 %v1482, %v1512
    %v1523 = vadd.f32 %v1483, %v1514
    %v1524 = vadd.f32 %v1484, %v1516
    %1525 = vset.pattern.permute.xlu0 6
    %1526 = vperm.xlu0 %1525, %v1297
    %v1527 = vpop.permute.xlu0 %1526
    %1529 = vset.pattern.permute.xlu0 6
    %1530 = vperm.xlu0 %1529, %v1298
    %v1531 = vpop.permute.xlu0 %1530
    %1533 = vset.pattern.permute.xlu0 6
    %1534 = vperm.xlu0 %1533, %v1299
    %v1535 = vpop.permute.xlu0 %1534
    %1537 = vset.pattern.permute.xlu0 6
    %1538 = vperm.xlu0 %1537, %v1300
    %v1539 = vpop.permute.xlu0 %1538
    %v1541 = vmul.f32 %v1527, %v1288
    %v1542 = vmul.f32 %v1531, %v1290
    %v1543 = vmul.f32 %v1535, %v1293
    %v1544 = vmul.f32 %v1539, %v1295
    %1549 = vrot.lane.b32.xlu0 %v1541, 122
    %v1550 = vpop.permute.xlu0 %1549
    %1551 = vrot.lane.b32.xlu0 %v1542, 122
    %v1552 = vpop.permute.xlu0 %1551
    %1553 = vrot.lane.b32.xlu0 %v1543, 122
    %v1554 = vpop.permute.xlu0 %1553
    %1555 = vrot.lane.b32.xlu0 %v1544, 122
    %v1556 = vpop.permute.xlu0 %1555
    %v1561 = vadd.f32 %v1521, %v1550
    %v1562 = vadd.f32 %v1522, %v1552
    %v1563 = vadd.f32 %v1523, %v1554
    %v1564 = vadd.f32 %v1524, %v1556
    %1565 = vset.pattern.permute.xlu0 7
    %1566 = vperm.xlu0 %1565, %v1297
    %v1567 = vpop.permute.xlu0 %1566
    %1569 = vset.pattern.permute.xlu0 7
    %1570 = vperm.xlu0 %1569, %v1298
    %v1571 = vpop.permute.xlu0 %1570
    %1573 = vset.pattern.permute.xlu0 7
    %1574 = vperm.xlu0 %1573, %v1299
    %v1575 = vpop.permute.xlu0 %1574
    %1577 = vset.pattern.permute.xlu0 7
    %1578 = vperm.xlu0 %1577, %v1300
    %v1579 = vpop.permute.xlu0 %1578
    %v1581 = vmul.f32 %v1567, %v1288
    %v1582 = vmul.f32 %v1571, %v1290
    %v1583 = vmul.f32 %v1575, %v1293
    %v1584 = vmul.f32 %v1579, %v1295
    %1589 = vrot.lane.b32.xlu0 %v1581, 121
    %v1590 = vpop.permute.xlu0 %1589
    %1591 = vrot.lane.b32.xlu0 %v1582, 121
    %v1592 = vpop.permute.xlu0 %1591
    %1593 = vrot.lane.b32.xlu0 %v1583, 121
    %v1594 = vpop.permute.xlu0 %1593
    %1595 = vrot.lane.b32.xlu0 %v1584, 121
    %v1596 = vpop.permute.xlu0 %1595
    %v1601 = vadd.f32 %v1561, %v1590
    %v1602 = vadd.f32 %v1562, %v1592
    %v1603 = vadd.f32 %v1563, %v1594
    %v1604 = vadd.f32 %v1564, %v1596
    %1605 = vset.pattern.permute.xlu0 8
    %1606 = vperm.xlu0 %1605, %v1297
    %v1607 = vpop.permute.xlu0 %1606
    %1609 = vset.pattern.permute.xlu0 8
    %1610 = vperm.xlu0 %1609, %v1298
    %v1611 = vpop.permute.xlu0 %1610
    %1613 = vset.pattern.permute.xlu0 8
    %1614 = vperm.xlu0 %1613, %v1299
    %v1615 = vpop.permute.xlu0 %1614
    %1617 = vset.pattern.permute.xlu0 8
    %1618 = vperm.xlu0 %1617, %v1300
    %v1619 = vpop.permute.xlu0 %1618
    %v1621 = vmul.f32 %v1607, %v1288
    %v1622 = vmul.f32 %v1611, %v1290
    %v1623 = vmul.f32 %v1615, %v1293
    %v1624 = vmul.f32 %v1619, %v1295
    %1629 = vrot.lane.b32.xlu0 %v1621, 120
    %v1630 = vpop.permute.xlu0 %1629
    %1631 = vrot.lane.b32.xlu0 %v1622, 120
    %v1632 = vpop.permute.xlu0 %1631
    %1633 = vrot.lane.b32.xlu0 %v1623, 120
    %v1634 = vpop.permute.xlu0 %1633
    %1635 = vrot.lane.b32.xlu0 %v1624, 120
    %v1636 = vpop.permute.xlu0 %1635
    %v1641 = vadd.f32 %v1601, %v1630
    %v1642 = vadd.f32 %v1602, %v1632
    %v1643 = vadd.f32 %v1603, %v1634
    %v1644 = vadd.f32 %v1604, %v1636
    %1645 = vset.pattern.permute.xlu0 9
    %1646 = vperm.xlu0 %1645, %v1297
    %v1647 = vpop.permute.xlu0 %1646
    %1649 = vset.pattern.permute.xlu0 9
    %1650 = vperm.xlu0 %1649, %v1298
    %v1651 = vpop.permute.xlu0 %1650
    %1653 = vset.pattern.permute.xlu0 9
    %1654 = vperm.xlu0 %1653, %v1299
    %v1655 = vpop.permute.xlu0 %1654
    %1657 = vset.pattern.permute.xlu0 9
    %1658 = vperm.xlu0 %1657, %v1300
    %v1659 = vpop.permute.xlu0 %1658
    %v1661 = vmul.f32 %v1647, %v1288
    %v1662 = vmul.f32 %v1651, %v1290
    %v1663 = vmul.f32 %v1655, %v1293
    %v1664 = vmul.f32 %v1659, %v1295
    %1669 = vrot.lane.b32.xlu0 %v1661, 119
    %v1670 = vpop.permute.xlu0 %1669
    %1671 = vrot.lane.b32.xlu0 %v1662, 119
    %v1672 = vpop.permute.xlu0 %1671
    %1673 = vrot.lane.b32.xlu0 %v1663, 119
    %v1674 = vpop.permute.xlu0 %1673
    %1675 = vrot.lane.b32.xlu0 %v1664, 119
    %v1676 = vpop.permute.xlu0 %1675
    %v1681 = vadd.f32 %v1641, %v1670
    %v1682 = vadd.f32 %v1642, %v1672
    %v1683 = vadd.f32 %v1643, %v1674
    %v1684 = vadd.f32 %v1644, %v1676
    %1685 = vset.pattern.permute.xlu0 10
    %1686 = vperm.xlu0 %1685, %v1297
    %v1687 = vpop.permute.xlu0 %1686
    %1689 = vset.pattern.permute.xlu0 10
    %1690 = vperm.xlu0 %1689, %v1298
    %v1691 = vpop.permute.xlu0 %1690
    %1693 = vset.pattern.permute.xlu0 10
    %1694 = vperm.xlu0 %1693, %v1299
    %v1695 = vpop.permute.xlu0 %1694
    %1697 = vset.pattern.permute.xlu0 10
    %1698 = vperm.xlu0 %1697, %v1300
    %v1699 = vpop.permute.xlu0 %1698
    %v1701 = vmul.f32 %v1687, %v1288
    %v1702 = vmul.f32 %v1691, %v1290
    %v1703 = vmul.f32 %v1695, %v1293
    %v1704 = vmul.f32 %v1699, %v1295
    %1709 = vrot.lane.b32.xlu0 %v1701, 118
    %v1710 = vpop.permute.xlu0 %1709
    %1711 = vrot.lane.b32.xlu0 %v1702, 118
    %v1712 = vpop.permute.xlu0 %1711
    %1713 = vrot.lane.b32.xlu0 %v1703, 118
    %v1714 = vpop.permute.xlu0 %1713
    %1715 = vrot.lane.b32.xlu0 %v1704, 118
    %v1716 = vpop.permute.xlu0 %1715
    %v1721 = vadd.f32 %v1681, %v1710
    %v1722 = vadd.f32 %v1682, %v1712
    %v1723 = vadd.f32 %v1683, %v1714
    %v1724 = vadd.f32 %v1684, %v1716
    %1725 = vset.pattern.permute.xlu0 11
    %1726 = vperm.xlu0 %1725, %v1297
    %v1727 = vpop.permute.xlu0 %1726
    %1729 = vset.pattern.permute.xlu0 11
    %1730 = vperm.xlu0 %1729, %v1298
    %v1731 = vpop.permute.xlu0 %1730
    %1733 = vset.pattern.permute.xlu0 11
    %1734 = vperm.xlu0 %1733, %v1299
    %v1735 = vpop.permute.xlu0 %1734
    %1737 = vset.pattern.permute.xlu0 11
    %1738 = vperm.xlu0 %1737, %v1300
    %v1739 = vpop.permute.xlu0 %1738
    %v1741 = vmul.f32 %v1727, %v1288
    %v1742 = vmul.f32 %v1731, %v1290
    %v1743 = vmul.f32 %v1735, %v1293
    %v1744 = vmul.f32 %v1739, %v1295
    %1749 = vrot.lane.b32.xlu0 %v1741, 117
    %v1750 = vpop.permute.xlu0 %1749
    %1751 = vrot.lane.b32.xlu0 %v1742, 117
    %v1752 = vpop.permute.xlu0 %1751
    %1753 = vrot.lane.b32.xlu0 %v1743, 117
    %v1754 = vpop.permute.xlu0 %1753
    %1755 = vrot.lane.b32.xlu0 %v1744, 117
    %v1756 = vpop.permute.xlu0 %1755
    %v1761 = vadd.f32 %v1721, %v1750
    %v1762 = vadd.f32 %v1722, %v1752
    %v1763 = vadd.f32 %v1723, %v1754
    %v1764 = vadd.f32 %v1724, %v1756
    %1765 = vset.pattern.permute.xlu0 12
    %1766 = vperm.xlu0 %1765, %v1297
    %v1767 = vpop.permute.xlu0 %1766
    %1769 = vset.pattern.permute.xlu0 12
    %1770 = vperm.xlu0 %1769, %v1298
    %v1771 = vpop.permute.xlu0 %1770
    %1773 = vset.pattern.permute.xlu0 12
    %1774 = vperm.xlu0 %1773, %v1299
    %v1775 = vpop.permute.xlu0 %1774
    %1777 = vset.pattern.permute.xlu0 12
    %1778 = vperm.xlu0 %1777, %v1300
    %v1779 = vpop.permute.xlu0 %1778
    %v1781 = vmul.f32 %v1767, %v1288
    %v1782 = vmul.f32 %v1771, %v1290
    %v1783 = vmul.f32 %v1775, %v1293
    %v1784 = vmul.f32 %v1779, %v1295
    %1789 = vrot.lane.b32.xlu0 %v1781, 116
    %v1790 = vpop.permute.xlu0 %1789
    %1791 = vrot.lane.b32.xlu0 %v1782, 116
    %v1792 = vpop.permute.xlu0 %1791
    %1793 = vrot.lane.b32.xlu0 %v1783, 116
    %v1794 = vpop.permute.xlu0 %1793
    %1795 = vrot.lane.b32.xlu0 %v1784, 116
    %v1796 = vpop.permute.xlu0 %1795
    %v1801 = vadd.f32 %v1761, %v1790
    %v1802 = vadd.f32 %v1762, %v1792
    %v1803 = vadd.f32 %v1763, %v1794
    %v1804 = vadd.f32 %v1764, %v1796
    %1805 = vset.pattern.permute.xlu0 13
    %1806 = vperm.xlu0 %1805, %v1297
    %v1807 = vpop.permute.xlu0 %1806
    %1809 = vset.pattern.permute.xlu0 13
    %1810 = vperm.xlu0 %1809, %v1298
    %v1811 = vpop.permute.xlu0 %1810
    %1813 = vset.pattern.permute.xlu0 13
    %1814 = vperm.xlu0 %1813, %v1299
    %v1815 = vpop.permute.xlu0 %1814
    %1817 = vset.pattern.permute.xlu0 13
    %1818 = vperm.xlu0 %1817, %v1300
    %v1819 = vpop.permute.xlu0 %1818
    %v1821 = vmul.f32 %v1807, %v1288
    %v1822 = vmul.f32 %v1811, %v1290
    %v1823 = vmul.f32 %v1815, %v1293
    %v1824 = vmul.f32 %v1819, %v1295
    %1829 = vrot.lane.b32.xlu0 %v1821, 115
    %v1830 = vpop.permute.xlu0 %1829
    %1831 = vrot.lane.b32.xlu0 %v1822, 115
    %v1832 = vpop.permute.xlu0 %1831
    %1833 = vrot.lane.b32.xlu0 %v1823, 115
    %v1834 = vpop.permute.xlu0 %1833
    %1835 = vrot.lane.b32.xlu0 %v1824, 115
    %v1836 = vpop.permute.xlu0 %1835
    %v1841 = vadd.f32 %v1801, %v1830
    %v1842 = vadd.f32 %v1802, %v1832
    %v1843 = vadd.f32 %v1803, %v1834
    %v1844 = vadd.f32 %v1804, %v1836
    %1845 = vset.pattern.permute.xlu0 14
    %1846 = vperm.xlu0 %1845, %v1297
    %v1847 = vpop.permute.xlu0 %1846
    %1849 = vset.pattern.permute.xlu0 14
    %1850 = vperm.xlu0 %1849, %v1298
    %v1851 = vpop.permute.xlu0 %1850
    %1853 = vset.pattern.permute.xlu0 14
    %1854 = vperm.xlu0 %1853, %v1299
    %v1855 = vpop.permute.xlu0 %1854
    %1857 = vset.pattern.permute.xlu0 14
    %1858 = vperm.xlu0 %1857, %v1300
    %v1859 = vpop.permute.xlu0 %1858
    %v1861 = vmul.f32 %v1847, %v1288
    %v1862 = vmul.f32 %v1851, %v1290
    %v1863 = vmul.f32 %v1855, %v1293
    %v1864 = vmul.f32 %v1859, %v1295
    %1869 = vrot.lane.b32.xlu0 %v1861, 114
    %v1870 = vpop.permute.xlu0 %1869
    %1871 = vrot.lane.b32.xlu0 %v1862, 114
    %v1872 = vpop.permute.xlu0 %1871
    %1873 = vrot.lane.b32.xlu0 %v1863, 114
    %v1874 = vpop.permute.xlu0 %1873
    %1875 = vrot.lane.b32.xlu0 %v1864, 114
    %v1876 = vpop.permute.xlu0 %1875
    %v1881 = vadd.f32 %v1841, %v1870
    %v1882 = vadd.f32 %v1842, %v1872
    %v1883 = vadd.f32 %v1843, %v1874
    %v1884 = vadd.f32 %v1844, %v1876
    %1885 = vset.pattern.permute.xlu0 15
    %1886 = vperm.xlu0 %1885, %v1297
    %v1887 = vpop.permute.xlu0 %1886
    %1889 = vset.pattern.permute.xlu0 15
    %1890 = vperm.xlu0 %1889, %v1298
    %v1891 = vpop.permute.xlu0 %1890
    %1893 = vset.pattern.permute.xlu0 15
    %1894 = vperm.xlu0 %1893, %v1299
    %v1895 = vpop.permute.xlu0 %1894
    %1897 = vset.pattern.permute.xlu0 15
    %1898 = vperm.xlu0 %1897, %v1300
    %v1899 = vpop.permute.xlu0 %1898
    %v1901 = vmul.f32 %v1887, %v1288
    %v1902 = vmul.f32 %v1891, %v1290
    %v1903 = vmul.f32 %v1895, %v1293
    %v1904 = vmul.f32 %v1899, %v1295
    %1909 = vrot.lane.b32.xlu0 %v1901, 113
    %v1910 = vpop.permute.xlu0 %1909
    %1911 = vrot.lane.b32.xlu0 %v1902, 113
    %v1912 = vpop.permute.xlu0 %1911
    %1913 = vrot.lane.b32.xlu0 %v1903, 113
    %v1914 = vpop.permute.xlu0 %1913
    %1915 = vrot.lane.b32.xlu0 %v1904, 113
    %v1916 = vpop.permute.xlu0 %1915
    %v1921 = vadd.f32 %v1881, %v1910
    %v1922 = vadd.f32 %v1882, %v1912
    %v1923 = vadd.f32 %v1883, %v1914
    %v1924 = vadd.f32 %v1884, %v1916
    %v1925 = vld [vmem:[%s5] sm:$0xff]
    %v1926 = vld [vmem:[%s5 + $0x8] sm:$0xff]
    %v1927 = vld [vmem:[%s5 + $0x10] sm:$0xff]
    %v1928 = vld [vmem:[%s5 + $0x18] sm:$0xff]
    %v1929 = vld [vmem:[%s6] sm:$0xff]
    %v1930 = vld [vmem:[%s6 + $0x8] sm:$0xff]
    %v1931 = vld [vmem:[%s6 + $0x10] sm:$0xff]
    %v1932 = vld [vmem:[%s6 + $0x18] sm:$0xff]
    %1934 = vset.pattern.permute.xlu0 0
    %1935 = vperm.xlu0 %1934, %v1929
    %v1936 = vpop.permute.xlu0 %1935
    %1939 = vset.pattern.permute.xlu0 0
    %1940 = vperm.xlu0 %1939, %v1930
    %v1941 = vpop.permute.xlu0 %1940
    %1944 = vset.pattern.permute.xlu0 0
    %1945 = vperm.xlu0 %1944, %v1931
    %v1946 = vpop.permute.xlu0 %1945
    %1949 = vset.pattern.permute.xlu0 0
    %1950 = vperm.xlu0 %1949, %v1932
    %v1951 = vpop.permute.xlu0 %1950
    %vm1953 = vcmask 261120
    %v1955 = vsel %vm1953, %v1925, 0
    %v1958 = vsel %vm1953, %v1926, 0
    %v1961 = vsel %vm1953, %v1927, 0
    %v1964 = vsel %vm1953, %v1928, 0
    %1966 = vmatpush.msra.mxu0 0.0
    %1967 = vmatpush.msra.mxu0 0.0
    %1968 = vmatpush.msra.mxu0 0.0
    %1969 = vmatpush.msra.mxu0 0.0
    %1970 = vmatpush.msra.mxu0 0.0
    %1971 = vmatpush.msra.mxu0 0.0
    %1972 = vmatpush.msra.mxu0 0.0
    %1973 = vmatpush.msra.mxu0 0.0
    %1974 = vmatpush.msra.mxu0 0.0
    %1975 = vmatpush.msra.mxu0 0.0
    %1976 = vmatpush.msra.mxu0 0.0
    %1977 = vmatpush.msra.mxu0 0.0
    %1978 = vmatpush.msra.mxu0 %v1924
    %1979 = vmatpush.msra.mxu0 %v1923
    %1980 = vmatpush.msra.mxu0 %v1922
    %1981 = vmatpush.msra.mxu0 %v1921
    %1982 = vmatmul.f32.gmra.mxu0 %v1955
    %v1983 = vpop.f32.mrf.mxu0
    %v1984 = vadd.f32 %v1936, %v1983
    %1985 = vmatmul.f32.gmra.mxu0 %v1958
    %v1986 = vpop.f32.mrf.mxu0
    %v1987 = vadd.f32 %v1941, %v1986
    %1988 = vmatmul.f32.gmra.mxu0 %v1961
    %v1989 = vpop.f32.mrf.mxu0
    %v1990 = vadd.f32 %v1946, %v1989
    %1991 = vmatmul.f32.gmra.mxu0 %v1964
    %v1992 = vpop.f32.mrf.mxu0
    %v1993 = vadd.f32 %v1951, %v1992
    %1994 = vdwg.mxu0
    %vm1995 = vcmp.gt.f32.partialorder %v1984, 0.0
    %vm1996 = vcmp.gt.f32.partialorder %v1987, 0.0
    %vm1997 = vcmp.gt.f32.partialorder %v1990, 0.0
    %vm1998 = vcmp.gt.f32.partialorder %v1993, 0.0
    %v1999 = vmin.f32 %v1984, 0.0
    %v2000 = vmin.f32 %v1987, 0.0
    %v2001 = vmin.f32 %v1990, 0.0
    %v2002 = vmin.f32 %v1993, 0.0
    %v2003 = vmul.f32 %v1999, 1.442695
    %v2004 = vpow.pop %v2003
    %v2005 = vmul.f32 %v2000, 1.442695
    %v2006 = vpow.pop %v2005
    %v2007 = vmul.f32 %v2001, 1.442695
    %v2008 = vpow.pop %v2007
    %v2009 = vmul.f32 %v2002, 1.442695
    %v2010 = vpow.pop %v2009
    %v2011 = vsub.f32 %v2004, 1.0
    %v2012 = vsub.f32 %v2006, 1.0
    %v2013 = vsub.f32 %v2008, 1.0
    %v2014 = vsub.f32 %v2010, 1.0
    %v2015 = vsel %vm1995, %v1984, %v2011
    %v2016 = vsel %vm1996, %v1987, %v2012
    %v2017 = vsel %vm1997, %v1990, %v2013
    %v2018 = vsel %vm1998, %v1993, %v2014
    %v2019 = vld [vmem:[%s7] sm:$0xff]
    %v2020 = vld [vmem:[%s7 + $0x8] sm:$0xff]
    %v2021 = vld [vmem:[%s7 + $0x10] sm:$0xff]
    %v2022 = vld [vmem:[%s7 + $0x18] sm:$0xff]
    %v2023 = vmul.f32 %v2015, %v2019
    %v2024 = vmul.f32 %v2016, %v2020
    %v2025 = vmul.f32 %v2017, %v2021
    %v2026 = vmul.f32 %v2018, %v2022
    %vm2027 = vcmask 793600
    %v2028 = vsel %vm2027, %v2023, 0.0
    %2029 = vadd.xlane.f32.xlu0 %v2028
    %v2030 = vpop.xlane.xlu0 %2029
    %v2031 = vsel %vm2027, %v2024, 0.0
    %2032 = vadd.xlane.f32.xlu0 %v2031
    %v2033 = vpop.xlane.xlu0 %2032
    %v2034 = vsel %vm2027, %v2025, 0.0
    %2035 = vadd.xlane.f32.xlu0 %v2034
    %v2036 = vpop.xlane.xlu0 %2035
    %v2037 = vsel %vm2027, %v2026, 0.0
    %2038 = vadd.xlane.f32.xlu0 %v2037
    %v2039 = vpop.xlane.xlu0 %2038
    %s2040 = scalar_lea.vmem %s7, 32
    %v2041 = vld [vmem:[%s2040] sm:$0xff]
    %v2042 = vld [vmem:[%s2040 + $0x8] sm:$0xff]
    %v2043 = vld [vmem:[%s2040 + $0x10] sm:$0xff]
    %v2044 = vld [vmem:[%s2040 + $0x18] sm:$0xff]
    %v2045 = vmul.f32 %v2015, %v2041
    %v2046 = vmul.f32 %v2016, %v2042
    %v2047 = vmul.f32 %v2017, %v2043
    %v2048 = vmul.f32 %v2018, %v2044
    %v2049 = vsel %vm2027, %v2045, 0.0
    %2050 = vadd.xlane.f32.xlu0 %v2049
    %v2051 = vpop.xlane.xlu0 %2050
    %v2052 = vsel %vm2027, %v2046, 0.0
    %2053 = vadd.xlane.f32.xlu0 %v2052
    %v2054 = vpop.xlane.xlu0 %2053
    %v2055 = vsel %vm2027, %v2047, 0.0
    %2056 = vadd.xlane.f32.xlu0 %v2055
    %v2057 = vpop.xlane.xlu0 %2056
    %v2058 = vsel %vm2027, %v2048, 0.0
    %2059 = vadd.xlane.f32.xlu0 %v2058
    %v2060 = vpop.xlane.xlu0 %2059
    %v2061 = vsel %vm1208, %v2030, %v2051
    %v2062 = vsel %vm1208, %v2033, %v2054
    %v2063 = vsel %vm1208, %v2036, %v2057
    %v2064 = vsel %vm1208, %v2039, %v2060
    %v2065 = vld [vmem:[%s8] sm:$0x3]
    %v2066 = vld [vmem:[%s9] sm:$0x1]
    %v2068 = vperm.slane %v2066, 0
    %v2071 = vsel %vm1953, %v2065, 0
    %2073 = vmatpush.msra.mxu0 0.0
    %2074 = vmatpush.msra.mxu0 0.0
    %2075 = vmatpush.msra.mxu0 0.0
    %2076 = vmatpush.msra.mxu0 0.0
    %2077 = vmatpush.msra.mxu0 0.0
    %2078 = vmatpush.msra.mxu0 0.0
    %2079 = vmatpush.msra.mxu0 0.0
    %2080 = vmatpush.msra.mxu0 0.0
    %2081 = vmatpush.msra.mxu0 0.0
    %2082 = vmatpush.msra.mxu0 0.0
    %2083 = vmatpush.msra.mxu0 0.0
    %2084 = vmatpush.msra.mxu0 0.0
    %2085 = vmatpush.msra.mxu0 %v2064
    %2086 = vmatpush.msra.mxu0 %v2063
    %2087 = vmatpush.msra.mxu0 %v2062
    %2088 = vmatpush.msra.mxu0 %v2061
    %2089 = vmatmul.f32.gmra.mxu0 %v2071
    %v2090 = vpop.f32.mrf.mxu0
    %v2091 = vadd.f32 %v2068, %v2090
    %2092 = vdwg.mxu0
    %vm2093 = vcmask 9216
    %2094 = vst.msk [vmem:[#allocation2] sm:$0x3] %vm2093, %v2091
    %v2095 = vsel %vm2093, %v2091, -inf
    %2096 = vmax.xlane.f32.xlu0 %v2095
    %v2097 = vpop.xlane.xlu0 %2096
    %v2098 = vsub.f32 %v2091, %v2097
    %v2099 = vmul.f32 %v2098, 1.442695
    %v2100 = vpow.pop %v2099
    %v2101 = vsel %vm2093, %v2100, 0.0
    %2102 = vadd.xlane.f32.xlu0 %v2101
    %v2103 = vpop.xlane.xlu0 %2102
    %v2104 = vrcp.pop %v2103
    %v2105 = vmul.f32 %v2103, %v2104
    %v2106 = vsub.f32 1.0, %v2105
    %v2107 = vmul.f32 %v2104, %v2106
    %v2108 = vadd.f32 %v2104, %v2107
    %vm2109 = vweird.f32 %v2103
    %vm2110 = vweird.f32 %v2104
    %vm2111 = vmor %vm2109, %vm2110
    %v2112 = vsel %vm2111, %v2104, %v2108
    %v2113 = vand.u32 2147483647, %v2103
    %vm2114 = vcmp.eq.f32.partialorder %v2113, 8.507059e+37
    %v2115 = vand.u32 %v2103, 2147483648
    %v2116 = vor.u32 1.1754944e-38, %v2115
    %v2117 = vsel %vm2114, %v2116, %v2112
    %v2118 = vmul.f32 %v2100, %v2117
    %2119 = vst.msk [vmem:[#allocation4] sm:$0x3] %vm2093, %v2118
    // Predicated region
    $region42: #{eeg_forward.1} parent=1 // pred_check
      _
    $region43: #{eeg_forward.1} parent=1 // pred_check_branch
      %2121 = sbr.rel (0) target = $region45
    $region44: #{eeg_forward.1} parent=1 // pred_region
      %2123 = vsyncadd [#allocation3], 0
      %s2125 = sshll.u32 [#allocation2], 4
      %s2126 = int_to_ptr.vmem [resolvable:$true] %s2125
      %s2127 = sshll.u32 %s10, 4
      %s2128 = int_to_ptr.hbm [resolvable:$true] %s2127
      %2130 = dma.vmem_to_hbm [thread:$0]  %s2126, 32, %s2128, [#allocation3]
    $region45: #{eeg_forward.1} parent=1 // pred_fallthru
      _
    // Predicated region
    $region46: #{eeg_forward.1} parent=1 // pred_check
      _
    $region47: #{eeg_forward.1} parent=1 // pred_check_branch
      %2132 = sbr.rel (0) target = $region49
    $region48: #{eeg_forward.1} parent=1 // pred_region
      %2134 = vsyncadd [#allocation5], 0
      %s2136 = sshll.u32 [#allocation4], 4
      %s2137 = int_to_ptr.vmem [resolvable:$true] %s2136
      %s2138 = sshll.u32 %s11, 4
      %s2139 = int_to_ptr.hbm [resolvable:$true] %s2138
      %2141 = dma.vmem_to_hbm [thread:$0]  %s2137, 32, %s2139, [#allocation5]
    $region49: #{eeg_forward.1} parent=1 // pred_fallthru
      _
    // Predicated region
    $region50: #{eeg_forward.1} parent=1 // pred_check
      _
    $region51: #{eeg_forward.1} parent=1 // pred_check_branch
      %2143 = sbr.rel (0) target = $region53
    $region52: #{eeg_forward.1} parent=1 // pred_region
      %2145 = dma.done [#allocation3], 32
    $region53: #{eeg_forward.1} parent=1 // pred_fallthru
      _
    // Predicated region
    $region54: #{eeg_forward.1} parent=1 // pred_check
      _
    $region55: #{eeg_forward.1} parent=1 // pred_check_branch
      %2147 = sbr.rel (0) target = $region57
    $region56: #{eeg_forward.1} parent=1 // pred_region
      %2149 = dma.done [#allocation5], 32
    $region57: #{eeg_forward.1} parent=1 // pred_fallthru
      _
    %2150 = vsyncpa [#allocation3], 1
    %2151 = vsyncpa [#allocation5], 1

</llo_original>
